<compile_context>
chip_gen: v6e
topology: v6e:2x2x1
jax: 0.10.0
libtpu: 0.0.40
codegen_flags: <defaults>
</compile_context>

<pallas_src>
import functools

import jax
import jax.numpy as jnp
from jax import lax
from jax.experimental import pallas as pl
from jax.experimental.pallas import tpu as pltpu

EPS = 1e-5


# ----------------------- pass 1: BN batch statistics (global reduction over tiles) -----------------
def _stats_kernel(z_ref, sum_ref, sq_ref):
    """Accumulate per-(packed-)channel sum / sum-of-squares directly into the resident outputs."""
    @pl.when((pl.program_id(0) == 0) & (pl.program_id(1) == 0))
    def _init():
        sum_ref[...] = jnp.zeros_like(sum_ref)
        sq_ref[...] = jnp.zeros_like(sq_ref)

    zb = z_ref[0]                                   # (th, Wp2, 4C) f32
    z2 = zb.reshape(-1, zb.shape[-1])               # (th*Wp2, 4C)
    sum_ref[...] += jnp.sum(z2, axis=0, keepdims=True)
    sq_ref[...] += jnp.sum(z2 * z2, axis=0, keepdims=True)


# ----------------------- pass 2: fused BN + ReLU + halo mask + stride-2 3x3 conv --------------------
def _fused_bn_relu_conv_kernel(z_ref, zh_ref, scale_ref, shift_ref, w_ref, b_ref, o_ref,
                               *, h, w, c, cout, th, wo):
    """z_ref : (1, th, Wp2, 4C) raw-x space-to-depth slab (f32); zh_ref: 1-row bottom halo.
    scale/shift: (1, 4C) f32 (BN folded to one affine, tiled over the 4 parity groups).
    w_ref: (4, 4C, Cout) bf16 repacked conv weight.  b_ref: (1, Cout) f32.
    o_ref: (1, th, Wo, Cout) f32 written lane-dense in Cout (NHWC)."""
    z = jnp.concatenate([z_ref[0], zh_ref[0]], axis=0)           # (th+1, Wp2, 4C) f32
    y = jnp.maximum(z * scale_ref[...] + shift_ref[...], 0.0)    # BN affine + ReLU (f32)

    # Conv padding applies to the *post*-ReLU activation, so re-zero every padded position
    # (the s2d view was built from zero-padded raw x, which BN would otherwise turn into shift).
    shp = z.shape
    r0 = pl.program_id(1) * th                                    # absolute first s2d row of slab
    rr = lax.broadcasted_iota(jnp.int32, shp, 0) + r0
    qq = lax.broadcasted_iota(jnp.int32, shp, 1)
    ll = lax.broadcasted_iota(jnp.int32, shp, 2)
    py = (ll >= 2 * c).astype(jnp.int32)                          # parity of padded row
    px = (((ll >= c) & (ll < 2 * c)) | (ll >= 3 * c)).astype(jnp.int32)   # parity of padded col
    row = 2 * rr + py                                             # position in the padded image
    col = 2 * qq + px
    valid = (row >= 1) & (row <= h) & (col >= 1) & (col <= w)
    yb = jnp.where(valid, y, 0.0).astype(jnp.bfloat16)            # single f32 -> bf16 cast

    acc = None
    for by in range(2):
        for bx in range(2):
            patch = yb[by:by + th, bx:bx + wo, :].reshape(th * wo, 4 * c)   # bf16, no copies to f32
            d = jnp.dot(patch, w_ref[by * 2 + bx], preferred_element_type=jnp.float32)
            acc = d if acc is None else acc + d
    acc = acc + b_ref[...]                                        # fused conv bias, (th*Wo, Cout)
    o_ref[0] = acc.reshape(th, wo, cout)                          # lane-dense NHWC store


# ------------------------------------------- helpers -----------------------------------------------
def _largest_divisor_leq(n, limit):
    limit = int(max(1, min(n, limit)))
    for d in range(limit, 0, -1):
        if n % d == 0:
            return d
    return 1


def _conv_tile_bytes(th, wp2, c4, wo, cout):
    z_rows = (th + 1) * wp2 * c4
    return (z_rows * 4 * 3            # f32 slab: 2 pipeline buffers + halo concat copy
            + z_rows * 4              # f32 BN / mask transients
            + z_rows * 2              # bf16 activation
            + th * wo * c4 * 2        # bf16 tap patch
            + th * wo * cout * 4 * 3)  # f32 accumulator + double-buffered output


def _pick_conv_row_tile(ho, wp2, c4, wo, cout, budget=24 << 20):
    """Largest divisor of Ho whose working set fits a conservative VMEM budget (v7x-safe)."""
    th = ho
    while th > 1 and _conv_tile_bytes(th, wp2, c4, wo, cout) > budget:
        th = _largest_divisor_leq(ho, th - 1)
    return th


def _vmem_limit_bytes(est):
    return int(min(max(2 * est, 32 << 20), 56 << 20))


# ------------------------------------------- wrapper -----------------------------------------------
def upsample_forward(x_nchw, params):
    """BatchNorm2d (training-mode batch stats) -> ReLU -> Conv2d(3x3, stride 2, pad 1)."""
    gamma, beta, conv_w, conv_b = params
    x_nchw = x_nchw.astype(jnp.float32)
    n, c, h, w = x_nchw.shape
    cout = conv_w.shape[0]
    m = n * h * w
    ho = (h - 1) // 2 + 1
    wo = (w - 1) // 2 + 1

    # ---- single XLA layout pass: NCHW -> zero-padded NHWC -> 2x2 space-to-depth (raw x, f32) ----
    eh = (h + 2) % 2
    ew = (w + 2) % 2
    hp2 = (h + 2 + eh) // 2          # == ho + 1
    wp2 = (w + 2 + ew) // 2          # == wo + 1
    c4 = 4 * c
    x_nhwc = jnp.transpose(x_nchw, (0, 2, 3, 1))
    xp = jnp.pad(x_nhwc, ((0, 0), (1, 1 + eh), (1, 1 + ew), (0, 0)))
    z_raw = (xp.reshape(n, hp2, 2, wp2, 2, c)
               .transpose(0, 1, 3, 2, 4, 5)
               .reshape(n, hp2, wp2, c4))

    # ---- pass 1: per-channel sum / sum-of-squares (zero padding adds nothing to the sums) ----
    th1 = _largest_divisor_leq(hp2, max(1, (2 << 20) // max(1, wp2 * c4 * 4)))
    grid1 = (n, hp2 // th1)
    est1 = th1 * wp2 * c4 * 4 * 3
    sums4, sqs4 = pl.pallas_call(
        _stats_kernel,
        grid=grid1,
        in_specs=[pl.BlockSpec((1, th1, wp2, c4), lambda i, r: (i, r, 0, 0))],
        out_specs=(pl.BlockSpec((1, c4), lambda i, r: (0, 0)),
                   pl.BlockSpec((1, c4), lambda i, r: (0, 0))),
        out_shape=(jax.ShapeDtypeStruct((1, c4), jnp.float32),
                   jax.ShapeDtypeStruct((1, c4), jnp.float32)),
        compiler_params=pltpu.CompilerParams(
            dimension_semantics=("arbitrary", "arbitrary"),
            vmem_limit_bytes=_vmem_limit_bytes(est1)),
        cost_estimate=pl.CostEstimate(flops=3 * n * hp2 * wp2 * c4, transcendentals=0,
                                      bytes_accessed=int(z_raw.size) * 4 + 2 * c4 * 4),
    )(z_raw)

    # Fold the 4 parity groups back to per-channel stats; biased variance = training-mode BN.
    ch_sum = jnp.sum(sums4.reshape(4, c), axis=0)
    ch_sq = jnp.sum(sqs4.reshape(4, c), axis=0)
    mean = ch_sum / m
    var = jnp.maximum(ch_sq / m - mean * mean, 0.0)   # clamp: guards E[x^2]-E[x]^2 cancellation
    inv_std = lax.rsqrt(var + EPS)
    scale = gamma.astype(jnp.float32) * inv_std       # BN folded to a single affine
    shift = beta.astype(jnp.float32) - mean * scale
    scale4 = jnp.tile(scale.reshape(1, c), (1, 4))
    shift4 = jnp.tile(shift.reshape(1, c), (1, 4))

    # Repack the 3x3 stride-2 weight as a 2x2 stride-1 weight over the space-to-depth view.
    # PyTorch layout (Cout, Cin, kh, kw); tap (dy, dx) -> block (dy//2, dx//2), parity (dy%2, dx%2);
    # z's last axis is ordered (parity_y, parity_x, cin), matching this merge.
    w4 = jnp.zeros((2, 2, 2, 2, c, cout), jnp.float32)
    for dy in range(3):
        for dx in range(3):
            w4 = w4.at[dy // 2, dx // 2, dy % 2, dx % 2].set(
                jnp.transpose(conv_w[:, :, dy, dx].astype(jnp.float32)))
    w4 = w4.reshape(4, c4, cout).astype(jnp.bfloat16)
    b2d = conv_b.reshape(1, cout).astype(jnp.float32)

    # ---- pass 2: fused BN + ReLU + conv, grid over (batch, output-row tiles), both parallel ----
    th = _pick_conv_row_tile(ho, wp2, c4, wo, cout)
    grid3 = (n, ho // th)
    est3 = _conv_tile_bytes(th, wp2, c4, wo, cout)
    conv_kernel = functools.partial(_fused_bn_relu_conv_kernel,
                                    h=h, w=w, c=c, cout=cout, th=th, wo=wo)
    out_nhwc = pl.pallas_call(
        conv_kernel,
        grid=grid3,
        in_specs=[
            pl.BlockSpec((1, th, wp2, c4), lambda i, r: (i, r, 0, 0)),            # main z slab
            pl.BlockSpec((1, 1, wp2, c4), lambda i, r: (i, r * th + th, 0, 0)),   # 1-row bottom halo
            pl.BlockSpec((1, c4), lambda i, r: (0, 0)),                           # resident scale
            pl.BlockSpec((1, c4), lambda i, r: (0, 0)),                           # resident shift
            pl.BlockSpec((4, c4, cout), lambda i, r: (0, 0, 0)),                  # resident weights
            pl.BlockSpec((1, cout), lambda i, r: (0, 0)),                         # resident bias
        ],
        out_specs=pl.BlockSpec((1, th, wo, cout), lambda i, r: (i, r, 0, 0)),
        out_shape=jax.ShapeDtypeStruct((n, ho, wo, cout), jnp.float32),
        compiler_params=pltpu.CompilerParams(
            dimension_semantics=("parallel", "parallel"),
            vmem_limit_bytes=_vmem_limit_bytes(est3)),
        cost_estimate=pl.CostEstimate(
            flops=2 * n * ho * wo * 16 * c * cout, transcendentals=0,
            bytes_accessed=int(z_raw.size) * 4 + int(w4.size) * 2 + n * ho * wo * cout * 4),
    )(z_raw, z_raw, scale4, shift4, w4, b2d)

    # Output is the smallest tensor in the pipeline; its NHWC -> NCHW transpose is left to XLA.
    return jnp.transpose(out_nhwc, (0, 3, 1, 2))


# ------------------------------------------- test --------------------------------------------------
def init_params(key, cin, cout):
    ks = jax.random.split(key, 4)
    gamma = 1.0 + 0.1 * jax.random.normal(ks[0], (cin,), jnp.float32)
    beta = 0.1 * jax.random.normal(ks[1], (cin,), jnp.float32)
    conv_w = jax.random.normal(ks[2], (cout, cin, 3, 3), jnp.float32) / jnp.sqrt(9.0 * cin)
    conv_b = 0.1 * jax.random.normal(ks[3], (cout,), jnp.float32)
    return gamma, beta, conv_w, conv_b


def reference_forward(x, params):
    """Plain-JAX reference (conv inputs quantized to bf16 exactly like the kernel path)."""
    gamma, beta, conv_w, conv_b = params
    mean = jnp.mean(x, axis=(0, 2, 3))
    var = jnp.mean(x * x, axis=(0, 2, 3)) - mean * mean
    scale = gamma * jax.lax.rsqrt(var + EPS)
    shift = beta - mean * scale
    y = jnp.maximum(x * scale[None, :, None, None] + shift[None, :, None, None], 0.0)
    y = y.astype(jnp.bfloat16).astype(jnp.float32)
    wq = conv_w.astype(jnp.bfloat16).astype(jnp.float32)
    out = jax.lax.conv_general_dilated(
        y, wq, window_strides=(2, 2), padding=((1, 1), (1, 1)),
        dimension_numbers=("NCHW", "OIHW", "NCHW"))
    return out + conv_b[None, :, None, None]


if __name__ == "__main__":
    key = jax.random.PRNGKey(0)
    k_x, k_p = jax.random.split(key)

    N, C_IN, H, W = 2, 4, 16, 16
    C_OUT = 8
    x = jax.random.normal(k_x, (N, C_IN, H, W), jnp.float32)
    params = init_params(k_p, C_IN, C_OUT)

    fwd = jax.jit(upsample_forward)
    out = jax.block_until_ready(fwd(x, params))

    H_OUT = (H - 1) // 2 + 1
    W_OUT = (W - 1) // 2 + 1
    assert out.shape == (N, C_OUT, H_OUT, W_OUT)
    assert out.dtype == jnp.float32
    assert bool(jnp.all(jnp.isfinite(out)))

    ref = reference_forward(x, params)
    err = float(jnp.max(jnp.abs(out - ref)))
    assert err < 3e-2, f"max abs error vs reference too large: {err}"
    print("KERNEL_OK")
</pallas_src>

<mosaic_0001>
module attributes {stable_mosaic.version = 11 : i64} {
  func.func @_stats_kernel(%arg0: i32, %arg1: i32, %arg2: memref<1x9x9x16xf32, #tpu.memory_space<vmem>>, %arg3: memref<1x16xf32, #tpu.memory_space<vmem>>, %arg4: memref<1x16xf32, #tpu.memory_space<vmem>>) attributes {dimension_semantics = [#tpu.dimension_semantics<arbitrary>, #tpu.dimension_semantics<arbitrary>], iteration_bounds = array<i64: 2, 1>, scalar_prefetch = 0 : i64, scratch_operands = 0 : i64, tpu.core_type = #tpu.core_type<tc>, window_params = [{transform_indices = @transform_0, window_bounds = array<i64: 1, 9, 9, 16>}, {pipeline_mode = #tpu.pipeline_mode<synchronous>, transform_indices = @transform_1, window_bounds = array<i64: 1, 16>}, {pipeline_mode = #tpu.pipeline_mode<synchronous>, transform_indices = @transform_2, window_bounds = array<i64: 1, 16>}]} {
    %c0_i32 = arith.constant 0 : i32
    %0 = arith.cmpi eq, %arg0, %c0_i32 : i32
    %c0_i32_0 = arith.constant 0 : i32
    %1 = arith.cmpi eq, %arg1, %c0_i32_0 : i32
    %2 = arith.andi %0, %1 : i1
    %3 = arith.extui %2 : i1 to i32
    %c0_i32_1 = arith.constant 0 : i32
    %4 = arith.cmpi ne, %3, %c0_i32_1 : i32
    scf.if %4 {
      %cst_14 = arith.constant 0.000000e+00 : f32
      %19 = vector.broadcast %cst_14 : f32 to vector<1x16xf32>
      %c0_15 = arith.constant 0 : index
      %c0_16 = arith.constant 0 : index
      %20 = vector.load %arg3[%c0_15, %c0_16] : memref<1x16xf32, #tpu.memory_space<vmem>>, vector<1x16xf32>
      tpu.vector_store %arg3[%c0_15, %c0_16], %19 {strides = array<i32>} : memref<1x16xf32, #tpu.memory_space<vmem>>, vector<1x16xf32>,
      %cst_17 = arith.constant 0.000000e+00 : f32
      %21 = vector.broadcast %cst_17 : f32 to vector<1x16xf32>
      %c0_18 = arith.constant 0 : index
      %c0_19 = arith.constant 0 : index
      %22 = vector.load %arg4[%c0_18, %c0_19] : memref<1x16xf32, #tpu.memory_space<vmem>>, vector<1x16xf32>
      tpu.vector_store %arg4[%c0_18, %c0_19], %21 {strides = array<i32>} : memref<1x16xf32, #tpu.memory_space<vmem>>, vector<1x16xf32>,
    } else {
    }
    %c0 = arith.constant 0 : index
    %c0_2 = arith.constant 0 : index
    %c0_3 = arith.constant 0 : index
    %c0_4 = arith.constant 0 : index
    %5 = vector.load %arg2[%c0, %c0_2, %c0_3, %c0_4] : memref<1x9x9x16xf32, #tpu.memory_space<vmem>>, vector<1x9x9x16xf32>
    %6 = vector.shape_cast %5 : vector<1x9x9x16xf32> to vector<9x9x16xf32>
    %7 = vector.shape_cast %6 : vector<9x9x16xf32> to vector<81x16xf32>
    %c0_5 = arith.constant 0 : index
    %c0_6 = arith.constant 0 : index
    %8 = vector.load %arg3[%c0_5, %c0_6] : memref<1x16xf32, #tpu.memory_space<vmem>>, vector<1x16xf32>
    %cst = arith.constant dense<0.000000e+00> : vector<16xf32>
    %9 = vector.multi_reduction <add>, %7, %cst [0] : vector<81x16xf32> to vector<16xf32>
    %10 = vector.shape_cast %9 : vector<16xf32> to vector<1x16xf32>
    %11 = arith.addf %8, %10 : vector<1x16xf32>
    %c0_7 = arith.constant 0 : index
    %c0_8 = arith.constant 0 : index
    %12 = vector.load %arg3[%c0_7, %c0_8] : memref<1x16xf32, #tpu.memory_space<vmem>>, vector<1x16xf32>
    tpu.vector_store %arg3[%c0_7, %c0_8], %11 {strides = array<i32>} : memref<1x16xf32, #tpu.memory_space<vmem>>, vector<1x16xf32>,
    %c0_9 = arith.constant 0 : index
    %c0_10 = arith.constant 0 : index
    %13 = vector.load %arg4[%c0_9, %c0_10] : memref<1x16xf32, #tpu.memory_space<vmem>>, vector<1x16xf32>
    %14 = arith.mulf %7, %7 : vector<81x16xf32>
    %cst_11 = arith.constant dense<0.000000e+00> : vector<16xf32>
    %15 = vector.multi_reduction <add>, %14, %cst_11 [0] : vector<81x16xf32> to vector<16xf32>
    %16 = vector.shape_cast %15 : vector<16xf32> to vector<1x16xf32>
    %17 = arith.addf %13, %16 : vector<1x16xf32>
    %c0_12 = arith.constant 0 : index
    %c0_13 = arith.constant 0 : index
    %18 = vector.load %arg4[%c0_12, %c0_13] : memref<1x16xf32, #tpu.memory_space<vmem>>, vector<1x16xf32>
    tpu.vector_store %arg4[%c0_12, %c0_13], %17 {strides = array<i32>} : memref<1x16xf32, #tpu.memory_space<vmem>>, vector<1x16xf32>,
    return
  }
  func.func @transform_0(%arg0: i32, %arg1: i32) -> (i32, i32, i32, i32) {
    %c0_i32 = arith.constant 0 : i32
    %c0_i32_0 = arith.constant 0 : i32
    %c0_i32_1 = arith.constant 0 : i32
    return %arg0, %arg1, %c0_i32, %c0_i32_0 : i32, i32, i32, i32
  }
  func.func @transform_1(%arg0: i32, %arg1: i32) -> (i32, i32) {
    %c0_i32 = arith.constant 0 : i32
    %c0_i32_0 = arith.constant 0 : i32
    %c0_i32_1 = arith.constant 0 : i32
    return %c0_i32, %c0_i32_0 : i32, i32
  }
  func.func @transform_2(%arg0: i32, %arg1: i32) -> (i32, i32) {
    %c0_i32 = arith.constant 0 : i32
    %c0_i32_0 = arith.constant 0 : i32
    %c0_i32_1 = arith.constant 0 : i32
    return %c0_i32, %c0_i32_0 : i32, i32
  }
}

module attributes {stable_mosaic.version = 11 : i64} {
  func.func @_fused_bn_relu_conv_kernel(%arg0: i32, %arg1: i32, %arg2: memref<1x8x9x16xf32, #tpu.memory_space<vmem>>, %arg3: memref<1x1x9x16xf32, #tpu.memory_space<vmem>>, %arg4: memref<1x16xf32, #tpu.memory_space<vmem>>, %arg5: memref<1x16xf32, #tpu.memory_space<vmem>>, %arg6: memref<4x16x8xbf16, #tpu.memory_space<vmem>>, %arg7: memref<1x8xf32, #tpu.memory_space<vmem>>, %arg8: memref<1x8x8x8xf32, #tpu.memory_space<vmem>>) attributes {dimension_semantics = [#tpu.dimension_semantics<parallel>, #tpu.dimension_semantics<parallel>], iteration_bounds = array<i64: 2, 1>, scalar_prefetch = 0 : i64, scratch_operands = 0 : i64, tpu.core_type = #tpu.core_type<tc>, window_params = [{transform_indices = @transform_0, window_bounds = array<i64: 1, 8, 9, 16>}, {transform_indices = @transform_1, window_bounds = array<i64: 1, 1, 9, 16>}, {pipeline_mode = #tpu.pipeline_mode<synchronous>, transform_indices = @transform_2, window_bounds = array<i64: 1, 16>}, {pipeline_mode = #tpu.pipeline_mode<synchronous>, transform_indices = @transform_3, window_bounds = array<i64: 1, 16>}, {pipeline_mode = #tpu.pipeline_mode<synchronous>, transform_indices = @transform_4, window_bounds = array<i64: 4, 16, 8>}, {pipeline_mode = #tpu.pipeline_mode<synchronous>, transform_indices = @transform_5, window_bounds = array<i64: 1, 8>}, {transform_indices = @transform_6, window_bounds = array<i64: 1, 8, 8, 8>}]} {
    %c0 = arith.constant 0 : index
    %c0_0 = arith.constant 0 : index
    %c0_1 = arith.constant 0 : index
    %c0_2 = arith.constant 0 : index
    %0 = vector.load %arg2[%c0, %c0_0, %c0_1, %c0_2] : memref<1x8x9x16xf32, #tpu.memory_space<vmem>>, vector<1x8x9x16xf32>
    %1 = vector.shape_cast %0 : vector<1x8x9x16xf32> to vector<8x9x16xf32>
    %c0_3 = arith.constant 0 : index
    %c0_4 = arith.constant 0 : index
    %c0_5 = arith.constant 0 : index
    %c0_6 = arith.constant 0 : index
    %2 = vector.load %arg3[%c0_3, %c0_4, %c0_5, %c0_6] : memref<1x1x9x16xf32, #tpu.memory_space<vmem>>, vector<1x1x9x16xf32>
    %3 = vector.shape_cast %2 : vector<1x1x9x16xf32> to vector<1x9x16xf32>
    %4 = tpu.concatenate %1, %3 in 0 : vector<8x9x16xf32>, vector<1x9x16xf32> -> vector<9x9x16xf32>
    %c0_7 = arith.constant 0 : index
    %c0_8 = arith.constant 0 : index
    %5 = vector.load %arg4[%c0_7, %c0_8] : memref<1x16xf32, #tpu.memory_space<vmem>>, vector<1x16xf32>
    %6 = vector.shape_cast %5 : vector<1x16xf32> to vector<1x1x16xf32>
    %7 = vector.broadcast %6 : vector<1x1x16xf32> to vector<9x9x16xf32>
    %8 = arith.mulf %4, %7 : vector<9x9x16xf32>
    %c0_9 = arith.constant 0 : index
    %c0_10 = arith.constant 0 : index
    %9 = vector.load %arg5[%c0_9, %c0_10] : memref<1x16xf32, #tpu.memory_space<vmem>>, vector<1x16xf32>
    %10 = vector.shape_cast %9 : vector<1x16xf32> to vector<1x1x16xf32>
    %11 = vector.broadcast %10 : vector<1x1x16xf32> to vector<9x9x16xf32>
    %12 = arith.addf %8, %11 : vector<9x9x16xf32>
    %cst = arith.constant 0.000000e+00 : f32
    %13 = vector.broadcast %cst : f32 to vector<9x9x16xf32>
    %14 = arith.maximumf %12, %13 : vector<9x9x16xf32>
    %c8_i32 = arith.constant 8 : i32
    %15 = arith.muli %arg1, %c8_i32 : i32
    %16 = tpu.iota {dimensions = array<i32: 0>} : vector<9x9x16xi32>
    %17 = vector.broadcast %15 : i32 to vector<9x9x16xi32>
    %18 = arith.addi %16, %17 : vector<9x9x16xi32>
    %19 = tpu.iota {dimensions = array<i32: 1>} : vector<9x9x16xi32>
    %20 = tpu.iota {dimensions = array<i32: 2>} : vector<9x9x16xi32>
    %c8_i32_11 = arith.constant 8 : i32
    %21 = vector.broadcast %c8_i32_11 : i32 to vector<9x9x16xi32>
    %22 = arith.cmpi sge, %20, %21 : vector<9x9x16xi32>
    %23 = arith.extui %22 : vector<9x9x16xi1> to vector<9x9x16xi32>
    %c4_i32 = arith.constant 4 : i32
    %24 = vector.broadcast %c4_i32 : i32 to vector<9x9x16xi32>
    %25 = arith.cmpi sge, %20, %24 : vector<9x9x16xi32>
    %c8_i32_12 = arith.constant 8 : i32
    %26 = vector.broadcast %c8_i32_12 : i32 to vector<9x9x16xi32>
    %27 = arith.cmpi slt, %20, %26 : vector<9x9x16xi32>
    %28 = arith.andi %25, %27 : vector<9x9x16xi1>
    %c12_i32 = arith.constant 12 : i32
    %29 = vector.broadcast %c12_i32 : i32 to vector<9x9x16xi32>
    %30 = arith.cmpi sge, %20, %29 : vector<9x9x16xi32>
    %31 = arith.ori %28, %30 : vector<9x9x16xi1>
    %32 = arith.extui %31 : vector<9x9x16xi1> to vector<9x9x16xi32>
    %c2_i32 = arith.constant 2 : i32
    %33 = vector.broadcast %c2_i32 : i32 to vector<9x9x16xi32>
    %34 = arith.muli %33, %18 : vector<9x9x16xi32>
    %35 = arith.addi %34, %23 : vector<9x9x16xi32>
    %c2_i32_13 = arith.constant 2 : i32
    %36 = vector.broadcast %c2_i32_13 : i32 to vector<9x9x16xi32>
    %37 = arith.muli %36, %19 : vector<9x9x16xi32>
    %38 = arith.addi %37, %32 : vector<9x9x16xi32>
    %c1_i32 = arith.constant 1 : i32
    %39 = vector.broadcast %c1_i32 : i32 to vector<9x9x16xi32>
    %40 = arith.cmpi sge, %35, %39 : vector<9x9x16xi32>
    %c16_i32 = arith.constant 16 : i32
    %41 = vector.broadcast %c16_i32 : i32 to vector<9x9x16xi32>
    %42 = arith.cmpi sle, %35, %41 : vector<9x9x16xi32>
    %43 = arith.andi %40, %42 : vector<9x9x16xi1>
    %c1_i32_14 = arith.constant 1 : i32
    %44 = vector.broadcast %c1_i32_14 : i32 to vector<9x9x16xi32>
    %45 = arith.cmpi sge, %38, %44 : vector<9x9x16xi32>
    %46 = arith.andi %43, %45 : vector<9x9x16xi1>
    %c16_i32_15 = arith.constant 16 : i32
    %47 = vector.broadcast %c16_i32_15 : i32 to vector<9x9x16xi32>
    %48 = arith.cmpi sle, %38, %47 : vector<9x9x16xi32>
    %49 = arith.andi %46, %48 : vector<9x9x16xi1>
    %cst_16 = arith.constant 0.000000e+00 : f32
    %50 = vector.broadcast %cst_16 : f32 to vector<9x9x16xf32>
    %51 = arith.select %49, %14, %50 : vector<9x9x16xi1>, vector<9x9x16xf32>
    %52 = arith.truncf %51 : vector<9x9x16xf32> to vector<9x9x16xbf16>
    %53 = vector.extract_strided_slice %52 {offsets = [0, 0, 0], sizes = [8, 8, 16], strides = [1, 1, 1]} : vector<9x9x16xbf16> to vector<8x8x16xbf16>
    %54 = vector.shape_cast %53 : vector<8x8x16xbf16> to vector<64x16xbf16>
    %c0_17 = arith.constant 0 : index
    %c0_18 = arith.constant 0 : index
    %c0_19 = arith.constant 0 : index
    %55 = vector.load %arg6[%c0_17, %c0_18, %c0_19] : memref<4x16x8xbf16, #tpu.memory_space<vmem>>, vector<1x16x8xbf16>
    %56 = vector.shape_cast %55 : vector<1x16x8xbf16> to vector<16x8xbf16>
    %cst_20 = arith.constant dense<0.000000e+00> : vector<64x8xf32>
    %57 = tpu.matmul %54, %56, %cst_20 {dimension_numbers = #tpu.dot_dimension_numbers<[1], [0], [0], [1], [0, 0, 1, 1], [], []>} : vector<64x16xbf16>, vector<16x8xbf16>, vector<64x8xf32> -> vector<64x8xf32>
    %58 = vector.extract_strided_slice %52 {offsets = [0, 1, 0], sizes = [8, 8, 16], strides = [1, 1, 1]} : vector<9x9x16xbf16> to vector<8x8x16xbf16>
    %59 = vector.shape_cast %58 : vector<8x8x16xbf16> to vector<64x16xbf16>
    %c1 = arith.constant 1 : index
    %c0_21 = arith.constant 0 : index
    %c0_22 = arith.constant 0 : index
    %60 = vector.load %arg6[%c1, %c0_21, %c0_22] : memref<4x16x8xbf16, #tpu.memory_space<vmem>>, vector<1x16x8xbf16>
    %61 = vector.shape_cast %60 : vector<1x16x8xbf16> to vector<16x8xbf16>
    %cst_23 = arith.constant dense<0.000000e+00> : vector<64x8xf32>
    %62 = tpu.matmul %59, %61, %cst_23 {dimension_numbers = #tpu.dot_dimension_numbers<[1], [0], [0], [1], [0, 0, 1, 1], [], []>} : vector<64x16xbf16>, vector<16x8xbf16>, vector<64x8xf32> -> vector<64x8xf32>
    %63 = arith.addf %57, %62 : vector<64x8xf32>
    %64 = vector.extract_strided_slice %52 {offsets = [1, 0, 0], sizes = [8, 8, 16], strides = [1, 1, 1]} : vector<9x9x16xbf16> to vector<8x8x16xbf16>
    %65 = vector.shape_cast %64 : vector<8x8x16xbf16> to vector<64x16xbf16>
    %c2 = arith.constant 2 : index
    %c0_24 = arith.constant 0 : index
    %c0_25 = arith.constant 0 : index
    %66 = vector.load %arg6[%c2, %c0_24, %c0_25] : memref<4x16x8xbf16, #tpu.memory_space<vmem>>, vector<1x16x8xbf16>
    %67 = vector.shape_cast %66 : vector<1x16x8xbf16> to vector<16x8xbf16>
    %cst_26 = arith.constant dense<0.000000e+00> : vector<64x8xf32>
    %68 = tpu.matmul %65, %67, %cst_26 {dimension_numbers = #tpu.dot_dimension_numbers<[1], [0], [0], [1], [0, 0, 1, 1], [], []>} : vector<64x16xbf16>, vector<16x8xbf16>, vector<64x8xf32> -> vector<64x8xf32>
    %69 = arith.addf %63, %68 : vector<64x8xf32>
    %70 = vector.extract_strided_slice %52 {offsets = [1, 1, 0], sizes = [8, 8, 16], strides = [1, 1, 1]} : vector<9x9x16xbf16> to vector<8x8x16xbf16>
    %71 = vector.shape_cast %70 : vector<8x8x16xbf16> to vector<64x16xbf16>
    %c3 = arith.constant 3 : index
    %c0_27 = arith.constant 0 : index
    %c0_28 = arith.constant 0 : index
    %72 = vector.load %arg6[%c3, %c0_27, %c0_28] : memref<4x16x8xbf16, #tpu.memory_space<vmem>>, vector<1x16x8xbf16>
    %73 = vector.shape_cast %72 : vector<1x16x8xbf16> to vector<16x8xbf16>
    %cst_29 = arith.constant dense<0.000000e+00> : vector<64x8xf32>
    %74 = tpu.matmul %71, %73, %cst_29 {dimension_numbers = #tpu.dot_dimension_numbers<[1], [0], [0], [1], [0, 0, 1, 1], [], []>} : vector<64x16xbf16>, vector<16x8xbf16>, vector<64x8xf32> -> vector<64x8xf32>
    %75 = arith.addf %69, %74 : vector<64x8xf32>
    %c0_30 = arith.constant 0 : index
    %c0_31 = arith.constant 0 : index
    %76 = vector.load %arg7[%c0_30, %c0_31] : memref<1x8xf32, #tpu.memory_space<vmem>>, vector<1x8xf32>
    %77 = vector.broadcast %76 : vector<1x8xf32> to vector<64x8xf32>
    %78 = arith.addf %75, %77 : vector<64x8xf32>
    %79 = vector.shape_cast %78 : vector<64x8xf32> to vector<8x8x8xf32>
    %c0_32 = arith.constant 0 : index
    %c0_33 = arith.constant 0 : index
    %c0_34 = arith.constant 0 : index
    %c0_35 = arith.constant 0 : index
    %80 = vector.load %arg8[%c0_32, %c0_33, %c0_34, %c0_35] : memref<1x8x8x8xf32, #tpu.memory_space<vmem>>, vector<1x8x8x8xf32>
    %81 = vector.shape_cast %80 : vector<1x8x8x8xf32> to vector<8x8x8xf32>
    %82 = vector.shape_cast %79 : vector<8x8x8xf32> to vector<1x8x8x8xf32>
    tpu.vector_store %arg8[%c0_32, %c0_33, %c0_34, %c0_35], %82 {strides = array<i32>} : memref<1x8x8x8xf32, #tpu.memory_space<vmem>>, vector<1x8x8x8xf32>,
    return
  }
  func.func @transform_0(%arg0: i32, %arg1: i32) -> (i32, i32, i32, i32) {
    %c0_i32 = arith.constant 0 : i32
    %c0_i32_0 = arith.constant 0 : i32
    %c0_i32_1 = arith.constant 0 : i32
    return %arg0, %arg1, %c0_i32, %c0_i32_0 : i32, i32, i32, i32
  }
  func.func @transform_1(%arg0: i32, %arg1: i32) -> (i32, i32, i32, i32) {
    %c8_i32 = arith.constant 8 : i32
    %0 = arith.muli %arg1, %c8_i32 : i32
    %c8_i32_0 = arith.constant 8 : i32
    %1 = arith.addi %0, %c8_i32_0 : i32
    %c0_i32 = arith.constant 0 : i32
    %c0_i32_1 = arith.constant 0 : i32
    %c0_i32_2 = arith.constant 0 : i32
    return %arg0, %1, %c0_i32, %c0_i32_1 : i32, i32, i32, i32
  }
  func.func @transform_2(%arg0: i32, %arg1: i32) -> (i32, i32) {
    %c0_i32 = arith.constant 0 : i32
    %c0_i32_0 = arith.constant 0 : i32
    %c0_i32_1 = arith.constant 0 : i32
    return %c0_i32, %c0_i32_0 : i32, i32
  }
  func.func @transform_3(%arg0: i32, %arg1: i32) -> (i32, i32) {
    %c0_i32 = arith.constant 0 : i32
    %c0_i32_0 = arith.constant 0 : i32
    %c0_i32_1 = arith.constant 0 : i32
    return %c0_i32, %c0_i32_0 : i32, i32
  }
  func.func @transform_4(%arg0: i32, %arg1: i32) -> (i32, i32, i32) {
    %c0_i32 = arith.constant 0 : i32
    %c0_i32_0 = arith.constant 0 : i32
    %c0_i32_1 = arith.constant 0 : i32
    %c0_i32_2 = arith.constant 0 : i32
    return %c0_i32, %c0_i32_0, %c0_i32_1 : i32, i32, i32
  }
  func.func @transform_5(%arg0: i32, %arg1: i32) -> (i32, i32) {
    %c0_i32 = arith.constant 0 : i32
    %c0_i32_0 = arith.constant 0 : i32
    %c0_i32_1 = arith.constant 0 : i32
    return %c0_i32, %c0_i32_0 : i32, i32
  }
  func.func @transform_6(%arg0: i32, %arg1: i32) -> (i32, i32, i32, i32) {
    %c0_i32 = arith.constant 0 : i32
    %c0_i32_0 = arith.constant 0 : i32
    %c0_i32_1 = arith.constant 0 : i32
    return %arg0, %arg1, %c0_i32, %c0_i32_0 : i32, i32, i32, i32
  }
}

</mosaic_0001>

<llo_original>
// kernel: upsample_forward.2
$region0: #{upsample_forward.2}
  #allocation0 [shape = 'u32[]', space=smem, size = 0x4, offset = 0x4, fixed_abs, tag = 'smem constant byte address 0x4 - core index']
  #allocation1 [shape = 'u32[144,128]{1,0:T(1,128)}', space=vmem, size = 0x12000, scoped, tag = 'internal scratch']
  %s0 = inlined_call_operand.vmem [shape: f32[2,9,9,16], index: 0, kind: input, shape index: {}]
  %s1 = inlined_call_operand.vmem [shape: f32[1,16], index: 1, kind: output, shape index: {0}]
  %s2 = inlined_call_operand.vmem [shape: f32[1,16], index: 2, kind: output, shape index: {1}]
  %3 = xla_tuple %s1, %s2
  %s4 = sld [smem:[#allocation0]]
  $region49: #{upsample_forward.2} parent=0
    _
  %s6 = ssub.s32 1, %s4
  %s7 = scalar_select 0, %s6, %s4
  loop: start=0, step=1, limit=4
  $region2: #{upsample_forward.2} parent=0 // loop_pre_header
    _
  $region3: #{upsample_forward.2} parent=0 // loop_header
    %s9 = sphi 0, %s13
    %p10 = scmp.ge.s32.totalorder %s9, 4
    %s16 = sphi 0, %s28
    %s17 = sphi 0, %s24
    %s18 = sphi 0, %s16
    %s19 = sphi 0, %s17
    %s20 = sphi 0, %s18
    %s21 = sphi 0, %s19
    %s33 = sphi 0, %s35
    %s36 = sphi 0, %s33
    %s37 = sphi 0, %s36
    %s53 = sphi 0, %s37
    %s57 = sphi 0, %s57
    %s59 = sphi 0, %s57
    %s60 = sphi 0, %s59
    %s74 = sphi 0, %s60
    %s78 = sphi 0, %s78
    %s80 = sphi 0, %s78
    %s81 = sphi 0, %s80
    %s95 = sphi 0, %s81
  $region4: #{upsample_forward.2} parent=0 // loop_header_branch
    %12 = sbr.rel (%p10) target = $region8
  $region5: #{upsample_forward.2} parent=0 // loop_body
    %s14 = ssub.s32 %s9, 1
    %s15 = ssub.s32 %s9, 2
    %s22 = sadd.s32 1, %s17
    %p23 = scmp.ge.s32.totalorder %s22, 1
    %s24 = scalar_select %p23, 0, %s22
    %s25 = sadd.s32 1, %s16
    %s26 = scalar_select %p23, %s25, %s16
    %p27 = scmp.ge.s32.totalorder %s26, 2
    %s28 = scalar_select %p27, 0, %s26
    %s29 = ssub.s32 %s16, %s28
    %s30 = ssub.s32 %s17, %s24
    %s31 = sor.u32 %s29, %s30
    %p32 = scmp.eq.s32.totalorder %s31, 0
    %s34 = sadd.s32 %s33, 1
    %s35 = scalar_select %p32, %s33, %s34
    %p38 = pneg %p32
    %p39 = scmp.eq.s32.totalorder %s9, 1
    %p40 = por %p38, %p39
    %p41 = scmp.ne.s32.totalorder %s33, %s36
    %p42 = scmp.eq.s32.totalorder %s9, 0
    %p43 = por %p41, %p42
    %p44 = scmp.ne.s32.totalorder %s33, %s36
    %p45 = scmp.eq.s32.totalorder %s14, 1
    %p46 = por %p44, %p45
    %p47 = scmp.ne.s32.totalorder %s36, %s37
    %p48 = scmp.eq.s32.totalorder %s14, 0
    %p49 = por %p47, %p48
    %p50 = scmp.ne.s32.totalorder %s36, %s37
    %p51 = scmp.eq.s32.totalorder %s15, 1
    %p52 = por %p50, %p51
    %p54 = scmp.ne.s32.totalorder %s37, %s53
    %p55 = scmp.eq.s32.totalorder %s15, 0
    %p56 = por %p54, %p55
    %s58 = sadd.s32 %s57, 1
    %p61 = scmp.eq.s32.totalorder %s9, 1
    %p62 = scmp.ne.s32.totalorder %s57, %s59
    %p63 = scmp.eq.s32.totalorder %s9, 0
    %p64 = por %p62, %p63
    %p65 = scmp.ne.s32.totalorder %s57, %s59
    %p66 = scmp.eq.s32.totalorder %s14, 1
    %p67 = por %p65, %p66
    %p68 = scmp.ne.s32.totalorder %s59, %s60
    %p69 = scmp.eq.s32.totalorder %s14, 0
    %p70 = por %p68, %p69
    %p71 = scmp.ne.s32.totalorder %s59, %s60
    %p72 = scmp.eq.s32.totalorder %s15, 1
    %p73 = por %p71, %p72
    %p75 = scmp.ne.s32.totalorder %s60, %s74
    %p76 = scmp.eq.s32.totalorder %s15, 0
    %p77 = por %p75, %p76
    %s79 = sadd.s32 %s78, 1
    %p82 = scmp.eq.s32.totalorder %s9, 1
    %p83 = scmp.ne.s32.totalorder %s78, %s80
    %p84 = scmp.eq.s32.totalorder %s9, 0
    %p85 = por %p83, %p84
    %p86 = scmp.ne.s32.totalorder %s78, %s80
    %p87 = scmp.eq.s32.totalorder %s14, 1
    %p88 = por %p86, %p87
    %p89 = scmp.ne.s32.totalorder %s80, %s81
    %p90 = scmp.eq.s32.totalorder %s14, 0
    %p91 = por %p89, %p90
    %p92 = scmp.ne.s32.totalorder %s80, %s81
    %p93 = scmp.eq.s32.totalorder %s15, 1
    %p94 = por %p92, %p93
    %p96 = scmp.ne.s32.totalorder %s81, %s95
    %p97 = scmp.eq.s32.totalorder %s15, 0
    %p98 = por %p96, %p97
    %p99 = scmp.le.s32.totalorder 1, %s9
    %p100 = scmp.lt.s32.totalorder %s9, 3
    %p101 = pnand %p99, %p100
    %p102 = pneg %p101
    // Predicated region
    $region9: #{upsample_forward.2} parent=5 // pred_check
      _
    $region10: #{upsample_forward.2} parent=5 // pred_check_branch
      %104 = sbr.rel (%p101) target = $region12
    $region11: #{upsample_forward.2} parent=5 // pred_region
      %s105 = ssub.s32 %s9, 1
    $region12: #{upsample_forward.2} parent=5 // pred_fallthru
      _
    %p106 = scmp.lt.s32.totalorder %s9, 2
    // Predicated region
    $region13: #{upsample_forward.2} parent=5 // pred_check
      %p107 = pneg %p106
    $region14: #{upsample_forward.2} parent=5 // pred_check_branch
      %109 = sbr.rel (%p107) target = $region16
    $region15: #{upsample_forward.2} parent=5 // pred_region
      // Predicated region
      $region17: #{upsample_forward.2} parent=15 // pred_check
        %p110 = pneg %p43
      $region18: #{upsample_forward.2} parent=15 // pred_check_branch
        %112 = sbr.rel (%p110) target = $region20
      $region19: #{upsample_forward.2} parent=15 // pred_region
        %s113 = smul.u32 9, %s17
        %p114 = scmp.lt.s32.totalorder %s16, 1
        %s115 = scalar_select %p114, %s16, 1
        %p116 = scmp.lt.s32.totalorder %s113, 8
        %s117 = scalar_select %p116, %s113, 8
        %s118 = smul.addr %s117, 2
        %s119 = smul.addr %s115, 18
        %s120 = sadd.s32 %s118, %s119
        %s121 = smul.addr %s120, 8
        %s122 = scalar_lea.vmem %s0, %s121
        %s123 = smul.u32 9, %s17
      $region20: #{upsample_forward.2} parent=15 // pred_fallthru
        _
    $region16: #{upsample_forward.2} parent=5 // pred_fallthru
      _
    %p124 = scmp.le.s32.totalorder 1, %s9
    %p125 = scmp.lt.s32.totalorder %s9, 3
    %p126 = pnand %p124, %p125
    %p127 = pneg %p126
    // Predicated region
    $region21: #{upsample_forward.2} parent=5 // pred_check
      _
    $region22: #{upsample_forward.2} parent=5 // pred_check_branch
      %129 = sbr.rel (%p126) target = $region24
    $region23: #{upsample_forward.2} parent=5 // pred_region
      %s130 = ssub.s32 %s9, 1
      %s131 = smul.u32 9, %s19
      %p132 = scmp.lt.s32.totalorder %s18, 1
      %s133 = scalar_select %p132, %s18, 1
      %p134 = scmp.lt.s32.totalorder %s131, 8
      %s135 = scalar_select %p134, %s131, 8
      %s136 = smul.addr %s135, 2
      %s137 = smul.addr %s133, 18
      %s138 = sadd.s32 %s136, %s137
      %s139 = smul.addr %s138, 8
      %s140 = scalar_lea.vmem %s0, %s139
      %p141 = pneg %p49
      %p142 = pneg %p46
      %p143 = pneg %p70
      %p144 = pneg %p67
      %p145 = pneg %p91
      %p146 = pneg %p88
      %s147 = smul.u32 9, %s19
      %p148 = scmp.lt.s32.totalorder %s18, 1
      %s149 = scalar_select %p148, %s18, 1
      %p150 = scmp.lt.s32.totalorder %s147, 8
      %s151 = scalar_select %p150, %s147, 8
      %s152 = smul.addr %s151, 2
      %s153 = smul.addr %s149, 18
      %s154 = sadd.s32 %s152, %s153
      %s155 = smul.addr %s154, 8
      %s156 = scalar_lea.vmem %s0, %s155
      %s157 = smul.u32 9, %s19
      %p158 = scmp.eq.s32.totalorder %s18, 0
      %p159 = scmp.eq.s32.totalorder %s19, 0
      %p160 = pnand %p158, %p159
      %p161 = pneg %p160
      // Predicated region
      $region25: #{upsample_forward.2} parent=23 // pred_check
        _
      $region26: #{upsample_forward.2} parent=23 // pred_check_branch
        %163 = sbr.rel (%p160) target = $region28
      $region27: #{upsample_forward.2} parent=23 // pred_region
        %vm164 = vcmask 122880
        %165 = vst.msk [vmem:[%s1] sm:$0x1] %vm164, 0.0
        %166 = vst.msk [vmem:[%s2] sm:$0x1] %vm164, 0.0
      $region28: #{upsample_forward.2} parent=23 // pred_fallthru
        _
      %v167 = vld [vmem:[%s156] sm:$0xff]
      %v168 = vld [vmem:[%s156 + $0x8] sm:$0x1]
      %v169 = vld [vmem:[%s156 + $0x10] sm:$0xff]
      %v170 = vld [vmem:[%s156 + $0x18] sm:$0x1]
      %v171 = vld [vmem:[%s156 + $0x20] sm:$0xff]
      %v172 = vld [vmem:[%s156 + $0x28] sm:$0x1]
      %v173 = vld [vmem:[%s156 + $0x30] sm:$0xff]
      %v174 = vld [vmem:[%s156 + $0x38] sm:$0x1]
      %v175 = vld [vmem:[%s156 + $0x40] sm:$0xff]
      %v176 = vld [vmem:[%s156 + $0x48] sm:$0x1]
      %v177 = vld [vmem:[%s156 + $0x50] sm:$0xff]
      %v178 = vld [vmem:[%s156 + $0x58] sm:$0x1]
      %v179 = vld [vmem:[%s156 + $0x60] sm:$0xff]
      %v180 = vld [vmem:[%s156 + $0x68] sm:$0x1]
      %v181 = vld [vmem:[%s156 + $0x70] sm:$0xff]
      %v182 = vld [vmem:[%s156 + $0x78] sm:$0x1]
      %v183 = vld [vmem:[%s156 + $0x80] sm:$0xff]
      %v184 = vld [vmem:[%s156 + $0x88] sm:$0x1]
      %v203 = vcombine.high %v167, %v167
      %v205 = vunpack.c.l.s4 1966171168
      %v206 = vunpack.c.0.s8 %v205
      %v207 = vlaneseq
      %v208 = vshrl.u32 %v207, 7
      %v209 = vsub.s32 %v206, %v208
      %v210 = vrot.slane %v167, %v209
      %v212 = vunpack.c.l.s4 1966171168
      %v213 = vunpack.c.0.s8 %v212
      %v214 = vlaneseq
      %v215 = vshrl.u32 %v214, 7
      %v216 = vsub.s32 %v213, %v215
      %v217 = vrot.slane %v203, %v216
      %v218 = vcombine.high %v210, %v210
      %v219 = vcombine.high %v217, %v217
      %v221 = vunpack.c.l.s4 1966171168
      %v222 = vunpack.c.0.s8 %v221
      %v223 = vlaneseq
      %v224 = vshrl.u32 %v223, 7
      %v225 = vsub.s32 %v222, %v224
      %v226 = vrot.slane %v210, %v225
      %v228 = vunpack.c.l.s4 1966171168
      %v229 = vunpack.c.0.s8 %v228
      %v230 = vlaneseq
      %v231 = vshrl.u32 %v230, 7
      %v232 = vsub.s32 %v229, %v231
      %v233 = vrot.slane %v217, %v232
      %v235 = vunpack.c.l.s4 1966171168
      %v236 = vunpack.c.0.s8 %v235
      %v237 = vlaneseq
      %v238 = vshrl.u32 %v237, 7
      %v239 = vsub.s32 %v236, %v238
      %v240 = vrot.slane %v218, %v239
      %v242 = vunpack.c.l.s4 1966171168
      %v243 = vunpack.c.0.s8 %v242
      %v244 = vlaneseq
      %v245 = vshrl.u32 %v244, 7
      %v246 = vsub.s32 %v243, %v245
      %v247 = vrot.slane %v219, %v246
      %v248 = vcombine.high %v226, %v226
      %v249 = vcombine.high %v233, %v233
      %v250 = vcombine.high %v240, %v240
      %v251 = vcombine.high %v247, %v247
      %v253 = vunpack.c.l.s4 1966171168
      %v254 = vunpack.c.0.s8 %v253
      %v255 = vlaneseq
      %v256 = vshrl.u32 %v255, 7
      %v257 = vsub.s32 %v254, %v256
      %v258 = vrot.slane %v168, %v257
      %v260 = vunpack.c.l.s4 1966171168
      %v261 = vunpack.c.0.s8 %v260
      %v262 = vlaneseq
      %v263 = vshrl.u32 %v262, 7
      %v264 = vsub.s32 %v261, %v263
      %v265 = vrot.slane %v258, %v264
      %v266 = vcombine.high %v169, %v169
      %v268 = vunpack.c.l.s4 1966171168
      %v269 = vunpack.c.0.s8 %v268
      %v270 = vlaneseq
      %v271 = vshrl.u32 %v270, 7
      %v272 = vsub.s32 %v269, %v271
      %v273 = vrot.slane %v169, %v272
      %v275 = vunpack.c.l.s4 1966171168
      %v276 = vunpack.c.0.s8 %v275
      %v277 = vlaneseq
      %v278 = vshrl.u32 %v277, 7
      %v279 = vsub.s32 %v276, %v278
      %v280 = vrot.slane %v266, %v279
      %v281 = vcombine.high %v273, %v273
      %v282 = vcombine.high %v280, %v280
      %v284 = vunpack.c.l.s4 1966171168
      %v285 = vunpack.c.0.s8 %v284
      %v286 = vlaneseq
      %v287 = vshrl.u32 %v286, 7
      %v288 = vsub.s32 %v285, %v287
      %v289 = vrot.slane %v273, %v288
      %v291 = vunpack.c.l.s4 1966171168
      %v292 = vunpack.c.0.s8 %v291
      %v293 = vlaneseq
      %v294 = vshrl.u32 %v293, 7
      %v295 = vsub.s32 %v292, %v294
      %v296 = vrot.slane %v280, %v295
      %v298 = vunpack.c.l.s4 1966171168
      %v299 = vunpack.c.0.s8 %v298
      %v300 = vlaneseq
      %v301 = vshrl.u32 %v300, 7
      %v302 = vsub.s32 %v299, %v301
      %v303 = vrot.slane %v281, %v302
      %v305 = vunpack.c.l.s4 1966171168
      %v306 = vunpack.c.0.s8 %v305
      %v307 = vlaneseq
      %v308 = vshrl.u32 %v307, 7
      %v309 = vsub.s32 %v306, %v308
      %v310 = vrot.slane %v282, %v309
      %v311 = vcombine.high %v289, %v289
      %v312 = vcombine.high %v296, %v296
      %v313 = vcombine.high %v303, %v303
      %v314 = vcombine.high %v310, %v310
      %v316 = vunpack.c.l.s4 1966171168
      %v317 = vunpack.c.0.s8 %v316
      %v318 = vlaneseq
      %v319 = vshrl.u32 %v318, 7
      %v320 = vsub.s32 %v317, %v319
      %v321 = vrot.slane %v170, %v320
      %v323 = vunpack.c.l.s4 1966171168
      %v324 = vunpack.c.0.s8 %v323
      %v325 = vlaneseq
      %v326 = vshrl.u32 %v325, 7
      %v327 = vsub.s32 %v324, %v326
      %v328 = vrot.slane %v321, %v327
      %v329 = vcombine.high %v171, %v171
      %v331 = vunpack.c.l.s4 1966171168
      %v332 = vunpack.c.0.s8 %v331
      %v333 = vlaneseq
      %v334 = vshrl.u32 %v333, 7
      %v335 = vsub.s32 %v332, %v334
      %v336 = vrot.slane %v171, %v335
      %v338 = vunpack.c.l.s4 1966171168
      %v339 = vunpack.c.0.s8 %v338
      %v340 = vlaneseq
      %v341 = vshrl.u32 %v340, 7
      %v342 = vsub.s32 %v339, %v341
      %v343 = vrot.slane %v329, %v342
      %v344 = vcombine.high %v336, %v336
      %v345 = vcombine.high %v343, %v343
      %v347 = vunpack.c.l.s4 1966171168
      %v348 = vunpack.c.0.s8 %v347
      %v349 = vlaneseq
      %v350 = vshrl.u32 %v349, 7
      %v351 = vsub.s32 %v348, %v350
      %v352 = vrot.slane %v336, %v351
      %v354 = vunpack.c.l.s4 1966171168
      %v355 = vunpack.c.0.s8 %v354
      %v356 = vlaneseq
      %v357 = vshrl.u32 %v356, 7
      %v358 = vsub.s32 %v355, %v357
      %v359 = vrot.slane %v343, %v358
      %v361 = vunpack.c.l.s4 1966171168
      %v362 = vunpack.c.0.s8 %v361
      %v363 = vlaneseq
      %v364 = vshrl.u32 %v363, 7
      %v365 = vsub.s32 %v362, %v364
      %v366 = vrot.slane %v344, %v365
      %v368 = vunpack.c.l.s4 1966171168
      %v369 = vunpack.c.0.s8 %v368
      %v370 = vlaneseq
      %v371 = vshrl.u32 %v370, 7
      %v372 = vsub.s32 %v369, %v371
      %v373 = vrot.slane %v345, %v372
      %v374 = vcombine.high %v352, %v352
      %v375 = vcombine.high %v359, %v359
      %v376 = vcombine.high %v366, %v366
      %v377 = vcombine.high %v373, %v373
      %v379 = vunpack.c.l.s4 1966171168
      %v380 = vunpack.c.0.s8 %v379
      %v381 = vlaneseq
      %v382 = vshrl.u32 %v381, 7
      %v383 = vsub.s32 %v380, %v382
      %v384 = vrot.slane %v172, %v383
      %v386 = vunpack.c.l.s4 1966171168
      %v387 = vunpack.c.0.s8 %v386
      %v388 = vlaneseq
      %v389 = vshrl.u32 %v388, 7
      %v390 = vsub.s32 %v387, %v389
      %v391 = vrot.slane %v384, %v390
      %v392 = vcombine.high %v173, %v173
      %v394 = vunpack.c.l.s4 1966171168
      %v395 = vunpack.c.0.s8 %v394
      %v396 = vlaneseq
      %v397 = vshrl.u32 %v396, 7
      %v398 = vsub.s32 %v395, %v397
      %v399 = vrot.slane %v173, %v398
      %v401 = vunpack.c.l.s4 1966171168
      %v402 = vunpack.c.0.s8 %v401
      %v403 = vlaneseq
      %v404 = vshrl.u32 %v403, 7
      %v405 = vsub.s32 %v402, %v404
      %v406 = vrot.slane %v392, %v405
      %v407 = vcombine.high %v399, %v399
      %v408 = vcombine.high %v406, %v406
      %v410 = vunpack.c.l.s4 1966171168
      %v411 = vunpack.c.0.s8 %v410
      %v412 = vlaneseq
      %v413 = vshrl.u32 %v412, 7
      %v414 = vsub.s32 %v411, %v413
      %v415 = vrot.slane %v399, %v414
      %v417 = vunpack.c.l.s4 1966171168
      %v418 = vunpack.c.0.s8 %v417
      %v419 = vlaneseq
      %v420 = vshrl.u32 %v419, 7
      %v421 = vsub.s32 %v418, %v420
      %v422 = vrot.slane %v406, %v421
      %v424 = vunpack.c.l.s4 1966171168
      %v425 = vunpack.c.0.s8 %v424
      %v426 = vlaneseq
      %v427 = vshrl.u32 %v426, 7
      %v428 = vsub.s32 %v425, %v427
      %v429 = vrot.slane %v407, %v428
      %v431 = vunpack.c.l.s4 1966171168
      %v432 = vunpack.c.0.s8 %v431
      %v433 = vlaneseq
      %v434 = vshrl.u32 %v433, 7
      %v435 = vsub.s32 %v432, %v434
      %v436 = vrot.slane %v408, %v435
      %v437 = vcombine.high %v415, %v415
      %v438 = vcombine.high %v422, %v422
      %v439 = vcombine.high %v429, %v429
      %v440 = vcombine.high %v436, %v436
      %v442 = vunpack.c.l.s4 1966171168
      %v443 = vunpack.c.0.s8 %v442
      %v444 = vlaneseq
      %v445 = vshrl.u32 %v444, 7
      %v446 = vsub.s32 %v443, %v445
      %v447 = vrot.slane %v174, %v446
      %v449 = vunpack.c.l.s4 1966171168
      %v450 = vunpack.c.0.s8 %v449
      %v451 = vlaneseq
      %v452 = vshrl.u32 %v451, 7
      %v453 = vsub.s32 %v450, %v452
      %v454 = vrot.slane %v447, %v453
      %v455 = vcombine.high %v175, %v175
      %v457 = vunpack.c.l.s4 1966171168
      %v458 = vunpack.c.0.s8 %v457
      %v459 = vlaneseq
      %v460 = vshrl.u32 %v459, 7
      %v461 = vsub.s32 %v458, %v460
      %v462 = vrot.slane %v175, %v461
      %v464 = vunpack.c.l.s4 1966171168
      %v465 = vunpack.c.0.s8 %v464
      %v466 = vlaneseq
      %v467 = vshrl.u32 %v466, 7
      %v468 = vsub.s32 %v465, %v467
      %v469 = vrot.slane %v455, %v468
      %v470 = vcombine.high %v462, %v462
      %v471 = vcombine.high %v469, %v469
      %v473 = vunpack.c.l.s4 1966171168
      %v474 = vunpack.c.0.s8 %v473
      %v475 = vlaneseq
      %v476 = vshrl.u32 %v475, 7
      %v477 = vsub.s32 %v474, %v476
      %v478 = vrot.slane %v462, %v477
      %v480 = vunpack.c.l.s4 1966171168
      %v481 = vunpack.c.0.s8 %v480
      %v482 = vlaneseq
      %v483 = vshrl.u32 %v482, 7
      %v484 = vsub.s32 %v481, %v483
      %v485 = vrot.slane %v469, %v484
      %v487 = vunpack.c.l.s4 1966171168
      %v488 = vunpack.c.0.s8 %v487
      %v489 = vlaneseq
      %v490 = vshrl.u32 %v489, 7
      %v491 = vsub.s32 %v488, %v490
      %v492 = vrot.slane %v470, %v491
      %v494 = vunpack.c.l.s4 1966171168
      %v495 = vunpack.c.0.s8 %v494
      %v496 = vlaneseq
      %v497 = vshrl.u32 %v496, 7
      %v498 = vsub.s32 %v495, %v497
      %v499 = vrot.slane %v471, %v498
      %v500 = vcombine.high %v478, %v478
      %v501 = vcombine.high %v485, %v485
      %v502 = vcombine.high %v492, %v492
      %v503 = vcombine.high %v499, %v499
      %v505 = vunpack.c.l.s4 1966171168
      %v506 = vunpack.c.0.s8 %v505
      %v507 = vlaneseq
      %v508 = vshrl.u32 %v507, 7
      %v509 = vsub.s32 %v506, %v508
      %v510 = vrot.slane %v176, %v509
      %v512 = vunpack.c.l.s4 1966171168
      %v513 = vunpack.c.0.s8 %v512
      %v514 = vlaneseq
      %v515 = vshrl.u32 %v514, 7
      %v516 = vsub.s32 %v513, %v515
      %v517 = vrot.slane %v510, %v516
      %v518 = vcombine.high %v177, %v177
      %v520 = vunpack.c.l.s4 1966171168
      %v521 = vunpack.c.0.s8 %v520
      %v522 = vlaneseq
      %v523 = vshrl.u32 %v522, 7
      %v524 = vsub.s32 %v521, %v523
      %v525 = vrot.slane %v177, %v524
      %v527 = vunpack.c.l.s4 1966171168
      %v528 = vunpack.c.0.s8 %v527
      %v529 = vlaneseq
      %v530 = vshrl.u32 %v529, 7
      %v531 = vsub.s32 %v528, %v530
      %v532 = vrot.slane %v518, %v531
      %v533 = vcombine.high %v525, %v525
      %v534 = vcombine.high %v532, %v532
      %v536 = vunpack.c.l.s4 1966171168
      %v537 = vunpack.c.0.s8 %v536
      %v538 = vlaneseq
      %v539 = vshrl.u32 %v538, 7
      %v540 = vsub.s32 %v537, %v539
      %v541 = vrot.slane %v525, %v540
      %v543 = vunpack.c.l.s4 1966171168
      %v544 = vunpack.c.0.s8 %v543
      %v545 = vlaneseq
      %v546 = vshrl.u32 %v545, 7
      %v547 = vsub.s32 %v544, %v546
      %v548 = vrot.slane %v532, %v547
      %v550 = vunpack.c.l.s4 1966171168
      %v551 = vunpack.c.0.s8 %v550
      %v552 = vlaneseq
      %v553 = vshrl.u32 %v552, 7
      %v554 = vsub.s32 %v551, %v553
      %v555 = vrot.slane %v533, %v554
      %v557 = vunpack.c.l.s4 1966171168
      %v558 = vunpack.c.0.s8 %v557
      %v559 = vlaneseq
      %v560 = vshrl.u32 %v559, 7
      %v561 = vsub.s32 %v558, %v560
      %v562 = vrot.slane %v534, %v561
      %v563 = vcombine.high %v541, %v541
      %v564 = vcombine.high %v548, %v548
      %v565 = vcombine.high %v555, %v555
      %v566 = vcombine.high %v562, %v562
      %v568 = vunpack.c.l.s4 1966171168
      %v569 = vunpack.c.0.s8 %v568
      %v570 = vlaneseq
      %v571 = vshrl.u32 %v570, 7
      %v572 = vsub.s32 %v569, %v571
      %v573 = vrot.slane %v178, %v572
      %v575 = vunpack.c.l.s4 1966171168
      %v576 = vunpack.c.0.s8 %v575
      %v577 = vlaneseq
      %v578 = vshrl.u32 %v577, 7
      %v579 = vsub.s32 %v576, %v578
      %v580 = vrot.slane %v573, %v579
      %v581 = vcombine.high %v179, %v179
      %v583 = vunpack.c.l.s4 1966171168
      %v584 = vunpack.c.0.s8 %v583
      %v585 = vlaneseq
      %v586 = vshrl.u32 %v585, 7
      %v587 = vsub.s32 %v584, %v586
      %v588 = vrot.slane %v179, %v587
      %v590 = vunpack.c.l.s4 1966171168
      %v591 = vunpack.c.0.s8 %v590
      %v592 = vlaneseq
      %v593 = vshrl.u32 %v592, 7
      %v594 = vsub.s32 %v591, %v593
      %v595 = vrot.slane %v581, %v594
      %v596 = vcombine.high %v588, %v588
      %v597 = vcombine.high %v595, %v595
      %v599 = vunpack.c.l.s4 1966171168
      %v600 = vunpack.c.0.s8 %v599
      %v601 = vlaneseq
      %v602 = vshrl.u32 %v601, 7
      %v603 = vsub.s32 %v600, %v602
      %v604 = vrot.slane %v588, %v603
      %v606 = vunpack.c.l.s4 1966171168
      %v607 = vunpack.c.0.s8 %v606
      %v608 = vlaneseq
      %v609 = vshrl.u32 %v608, 7
      %v610 = vsub.s32 %v607, %v609
      %v611 = vrot.slane %v595, %v610
      %v613 = vunpack.c.l.s4 1966171168
      %v614 = vunpack.c.0.s8 %v613
      %v615 = vlaneseq
      %v616 = vshrl.u32 %v615, 7
      %v617 = vsub.s32 %v614, %v616
      %v618 = vrot.slane %v596, %v617
      %v620 = vunpack.c.l.s4 1966171168
      %v621 = vunpack.c.0.s8 %v620
      %v622 = vlaneseq
      %v623 = vshrl.u32 %v622, 7
      %v624 = vsub.s32 %v621, %v623
      %v625 = vrot.slane %v597, %v624
      %v626 = vcombine.high %v604, %v604
      %v627 = vcombine.high %v611, %v611
      %v628 = vcombine.high %v618, %v618
      %v629 = vcombine.high %v625, %v625
      %v631 = vunpack.c.l.s4 1966171168
      %v632 = vunpack.c.0.s8 %v631
      %v633 = vlaneseq
      %v634 = vshrl.u32 %v633, 7
      %v635 = vsub.s32 %v632, %v634
      %v636 = vrot.slane %v180, %v635
      %v638 = vunpack.c.l.s4 1966171168
      %v639 = vunpack.c.0.s8 %v638
      %v640 = vlaneseq
      %v641 = vshrl.u32 %v640, 7
      %v642 = vsub.s32 %v639, %v641
      %v643 = vrot.slane %v636, %v642
      %v644 = vcombine.high %v181, %v181
      %v646 = vunpack.c.l.s4 1966171168
      %v647 = vunpack.c.0.s8 %v646
      %v648 = vlaneseq
      %v649 = vshrl.u32 %v648, 7
      %v650 = vsub.s32 %v647, %v649
      %v651 = vrot.slane %v181, %v650
      %v653 = vunpack.c.l.s4 1966171168
      %v654 = vunpack.c.0.s8 %v653
      %v655 = vlaneseq
      %v656 = vshrl.u32 %v655, 7
      %v657 = vsub.s32 %v654, %v656
      %v658 = vrot.slane %v644, %v657
      %v659 = vcombine.high %v651, %v651
      %v660 = vcombine.high %v658, %v658
      %v662 = vunpack.c.l.s4 1966171168
      %v663 = vunpack.c.0.s8 %v662
      %v664 = vlaneseq
      %v665 = vshrl.u32 %v664, 7
      %v666 = vsub.s32 %v663, %v665
      %v667 = vrot.slane %v651, %v666
      %v669 = vunpack.c.l.s4 1966171168
      %v670 = vunpack.c.0.s8 %v669
      %v671 = vlaneseq
      %v672 = vshrl.u32 %v671, 7
      %v673 = vsub.s32 %v670, %v672
      %v674 = vrot.slane %v658, %v673
      %v676 = vunpack.c.l.s4 1966171168
      %v677 = vunpack.c.0.s8 %v676
      %v678 = vlaneseq
      %v679 = vshrl.u32 %v678, 7
      %v680 = vsub.s32 %v677, %v679
      %v681 = vrot.slane %v659, %v680
      %v683 = vunpack.c.l.s4 1966171168
      %v684 = vunpack.c.0.s8 %v683
      %v685 = vlaneseq
      %v686 = vshrl.u32 %v685, 7
      %v687 = vsub.s32 %v684, %v686
      %v688 = vrot.slane %v660, %v687
      %v689 = vcombine.high %v667, %v667
      %v690 = vcombine.high %v674, %v674
      %v691 = vcombine.high %v681, %v681
      %v692 = vcombine.high %v688, %v688
      %v694 = vunpack.c.l.s4 1966171168
      %v695 = vunpack.c.0.s8 %v694
      %v696 = vlaneseq
      %v697 = vshrl.u32 %v696, 7
      %v698 = vsub.s32 %v695, %v697
      %v699 = vrot.slane %v182, %v698
      %v701 = vunpack.c.l.s4 1966171168
      %v702 = vunpack.c.0.s8 %v701
      %v703 = vlaneseq
      %v704 = vshrl.u32 %v703, 7
      %v705 = vsub.s32 %v702, %v704
      %v706 = vrot.slane %v699, %v705
      %v707 = vcombine.high %v183, %v183
      %v709 = vunpack.c.l.s4 1966171168
      %v710 = vunpack.c.0.s8 %v709
      %v711 = vlaneseq
      %v712 = vshrl.u32 %v711, 7
      %v713 = vsub.s32 %v710, %v712
      %v714 = vrot.slane %v183, %v713
      %v716 = vunpack.c.l.s4 1966171168
      %v717 = vunpack.c.0.s8 %v716
      %v718 = vlaneseq
      %v719 = vshrl.u32 %v718, 7
      %v720 = vsub.s32 %v717, %v719
      %v721 = vrot.slane %v707, %v720
      %v722 = vcombine.high %v714, %v714
      %v723 = vcombine.high %v721, %v721
      %v725 = vunpack.c.l.s4 1966171168
      %v726 = vunpack.c.0.s8 %v725
      %v727 = vlaneseq
      %v728 = vshrl.u32 %v727, 7
      %v729 = vsub.s32 %v726, %v728
      %v730 = vrot.slane %v714, %v729
      %v732 = vunpack.c.l.s4 1966171168
      %v733 = vunpack.c.0.s8 %v732
      %v734 = vlaneseq
      %v735 = vshrl.u32 %v734, 7
      %v736 = vsub.s32 %v733, %v735
      %v737 = vrot.slane %v721, %v736
      %v739 = vunpack.c.l.s4 1966171168
      %v740 = vunpack.c.0.s8 %v739
      %v741 = vlaneseq
      %v742 = vshrl.u32 %v741, 7
      %v743 = vsub.s32 %v740, %v742
      %v744 = vrot.slane %v722, %v743
      %v746 = vunpack.c.l.s4 1966171168
      %v747 = vunpack.c.0.s8 %v746
      %v748 = vlaneseq
      %v749 = vshrl.u32 %v748, 7
      %v750 = vsub.s32 %v747, %v749
      %v751 = vrot.slane %v723, %v750
      %v752 = vcombine.high %v730, %v730
      %v753 = vcombine.high %v737, %v737
      %v754 = vcombine.high %v744, %v744
      %v755 = vcombine.high %v751, %v751
      %v757 = vunpack.c.l.s4 1966171168
      %v758 = vunpack.c.0.s8 %v757
      %v759 = vlaneseq
      %v760 = vshrl.u32 %v759, 7
      %v761 = vsub.s32 %v758, %v760
      %v762 = vrot.slane %v184, %v761
      %v764 = vunpack.c.l.s4 1966171168
      %v765 = vunpack.c.0.s8 %v764
      %v766 = vlaneseq
      %v767 = vshrl.u32 %v766, 7
      %v768 = vsub.s32 %v765, %v767
      %v769 = vrot.slane %v762, %v768
      %v851 = vld [vmem:[%s1] sm:$0x1]
      %v852 = vcombine.low %v226, %v240
      %v853 = vcombine.low %v248, %v250
      %v854 = vcombine.low %v233, %v247
      %v855 = vcombine.low %v249, %v251
      %v857 = vunpack.c.l.s4 1966171168
      %v858 = vunpack.c.0.s8 %v857
      %v859 = vlaneseq
      %v860 = vshrl.u32 %v859, 7
      %v861 = vsub.s32 %v858, %v860
      %v862 = vrot.slane %v852, %v861
      %v864 = vunpack.c.l.s4 1966171168
      %v865 = vunpack.c.0.s8 %v864
      %v866 = vlaneseq
      %v867 = vshrl.u32 %v866, 7
      %v868 = vsub.s32 %v865, %v867
      %v869 = vrot.slane %v853, %v868
      %v871 = vunpack.c.l.s4 1966171168
      %v872 = vunpack.c.0.s8 %v871
      %v873 = vlaneseq
      %v874 = vshrl.u32 %v873, 7
      %v875 = vsub.s32 %v872, %v874
      %v876 = vrot.slane %v854, %v875
      %v878 = vunpack.c.l.s4 1966171168
      %v879 = vunpack.c.0.s8 %v878
      %v880 = vlaneseq
      %v881 = vshrl.u32 %v880, 7
      %v882 = vsub.s32 %v879, %v881
      %v883 = vrot.slane %v855, %v882
      %v884 = vcombine.low %v862, %v869
      %v885 = vcombine.low %v876, %v883
      %v887 = vunpack.c.l.s4 1966171168
      %v888 = vunpack.c.0.s8 %v887
      %v889 = vlaneseq
      %v890 = vshrl.u32 %v889, 7
      %v891 = vsub.s32 %v888, %v890
      %v892 = vrot.slane %v884, %v891
      %v894 = vunpack.c.l.s4 1966171168
      %v895 = vunpack.c.0.s8 %v894
      %v896 = vlaneseq
      %v897 = vshrl.u32 %v896, 7
      %v898 = vsub.s32 %v895, %v897
      %v899 = vrot.slane %v885, %v898
      %v900 = vcombine.low %v892, %v899
      %v901 = vcombine.low %v265, %v289
      %v902 = vcombine.low %v303, %v311
      %v903 = vcombine.low %v313, %v296
      %v904 = vcombine.low %v310, %v312
      %v906 = vunpack.c.l.s4 1966171168
      %v907 = vunpack.c.0.s8 %v906
      %v908 = vlaneseq
      %v909 = vshrl.u32 %v908, 7
      %v910 = vsub.s32 %v907, %v909
      %v911 = vrot.slane %v901, %v910
      %v913 = vunpack.c.l.s4 1966171168
      %v914 = vunpack.c.0.s8 %v913
      %v915 = vlaneseq
      %v916 = vshrl.u32 %v915, 7
      %v917 = vsub.s32 %v914, %v916
      %v918 = vrot.slane %v902, %v917
      %v920 = vunpack.c.l.s4 1966171168
      %v921 = vunpack.c.0.s8 %v920
      %v922 = vlaneseq
      %v923 = vshrl.u32 %v922, 7
      %v924 = vsub.s32 %v921, %v923
      %v925 = vrot.slane %v903, %v924
      %v927 = vunpack.c.l.s4 1966171168
      %v928 = vunpack.c.0.s8 %v927
      %v929 = vlaneseq
      %v930 = vshrl.u32 %v929, 7
      %v931 = vsub.s32 %v928, %v930
      %v932 = vrot.slane %v904, %v931
      %v933 = vcombine.low %v911, %v918
      %v934 = vcombine.low %v925, %v932
      %v936 = vunpack.c.l.s4 1966171168
      %v937 = vunpack.c.0.s8 %v936
      %v938 = vlaneseq
      %v939 = vshrl.u32 %v938, 7
      %v940 = vsub.s32 %v937, %v939
      %v941 = vrot.slane %v933, %v940
      %v943 = vunpack.c.l.s4 1966171168
      %v944 = vunpack.c.0.s8 %v943
      %v945 = vlaneseq
      %v946 = vshrl.u32 %v945, 7
      %v947 = vsub.s32 %v944, %v946
      %v948 = vrot.slane %v934, %v947
      %v949 = vcombine.low %v941, %v948
      %v950 = vcombine.low %v314, %v328
      %v951 = vcombine.low %v352, %v366
      %v952 = vcombine.low %v374, %v376
      %v953 = vcombine.low %v359, %v373
      %v955 = vunpack.c.l.s4 1966171168
      %v956 = vunpack.c.0.s8 %v955
      %v957 = vlaneseq
      %v958 = vshrl.u32 %v957, 7
      %v959 = vsub.s32 %v956, %v958
      %v960 = vrot.slane %v950, %v959
      %v962 = vunpack.c.l.s4 1966171168
      %v963 = vunpack.c.0.s8 %v962
      %v964 = vlaneseq
      %v965 = vshrl.u32 %v964, 7
      %v966 = vsub.s32 %v963, %v965
      %v967 = vrot.slane %v951, %v966
      %v969 = vunpack.c.l.s4 1966171168
      %v970 = vunpack.c.0.s8 %v969
      %v971 = vlaneseq
      %v972 = vshrl.u32 %v971, 7
      %v973 = vsub.s32 %v970, %v972
      %v974 = vrot.slane %v952, %v973
      %v976 = vunpack.c.l.s4 1966171168
      %v977 = vunpack.c.0.s8 %v976
      %v978 = vlaneseq
      %v979 = vshrl.u32 %v978, 7
      %v980 = vsub.s32 %v977, %v979
      %v981 = vrot.slane %v953, %v980
      %v982 = vcombine.low %v960, %v967
      %v983 = vcombine.low %v974, %v981
      %v985 = vunpack.c.l.s4 1966171168
      %v986 = vunpack.c.0.s8 %v985
      %v987 = vlaneseq
      %v988 = vshrl.u32 %v987, 7
      %v989 = vsub.s32 %v986, %v988
      %v990 = vrot.slane %v982, %v989
      %v992 = vunpack.c.l.s4 1966171168
      %v993 = vunpack.c.0.s8 %v992
      %v994 = vlaneseq
      %v995 = vshrl.u32 %v994, 7
      %v996 = vsub.s32 %v993, %v995
      %v997 = vrot.slane %v983, %v996
      %v998 = vcombine.low %v990, %v997
      %v999 = vcombine.low %v375, %v377
      %v1000 = vcombine.low %v391, %v415
      %v1001 = vcombine.low %v429, %v437
      %v1002 = vcombine.low %v439, %v422
      %v1004 = vunpack.c.l.s4 1966171168
      %v1005 = vunpack.c.0.s8 %v1004
      %v1006 = vlaneseq
      %v1007 = vshrl.u32 %v1006, 7
      %v1008 = vsub.s32 %v1005, %v1007
      %v1009 = vrot.slane %v999, %v1008
      %v1011 = vunpack.c.l.s4 1966171168
      %v1012 = vunpack.c.0.s8 %v1011
      %v1013 = vlaneseq
      %v1014 = vshrl.u32 %v1013, 7
      %v1015 = vsub.s32 %v1012, %v1014
      %v1016 = vrot.slane %v1000, %v1015
      %v1018 = vunpack.c.l.s4 1966171168
      %v1019 = vunpack.c.0.s8 %v1018
      %v1020 = vlaneseq
      %v1021 = vshrl.u32 %v1020, 7
      %v1022 = vsub.s32 %v1019, %v1021
      %v1023 = vrot.slane %v1001, %v1022
      %v1025 = vunpack.c.l.s4 1966171168
      %v1026 = vunpack.c.0.s8 %v1025
      %v1027 = vlaneseq
      %v1028 = vshrl.u32 %v1027, 7
      %v1029 = vsub.s32 %v1026, %v1028
      %v1030 = vrot.slane %v1002, %v1029
      %v1031 = vcombine.low %v1009, %v1016
      %v1032 = vcombine.low %v1023, %v1030
      %v1034 = vunpack.c.l.s4 1966171168
      %v1035 = vunpack.c.0.s8 %v1034
      %v1036 = vlaneseq
      %v1037 = vshrl.u32 %v1036, 7
      %v1038 = vsub.s32 %v1035, %v1037
      %v1039 = vrot.slane %v1031, %v1038
      %v1041 = vunpack.c.l.s4 1966171168
      %v1042 = vunpack.c.0.s8 %v1041
      %v1043 = vlaneseq
      %v1044 = vshrl.u32 %v1043, 7
      %v1045 = vsub.s32 %v1042, %v1044
      %v1046 = vrot.slane %v1032, %v1045
      %v1047 = vcombine.low %v1039, %v1046
      %v1048 = vcombine.low %v436, %v438
      %v1049 = vcombine.low %v440, %v454
      %v1050 = vcombine.low %v478, %v492
      %v1051 = vcombine.low %v500, %v502
      %v1053 = vunpack.c.l.s4 1966171168
      %v1054 = vunpack.c.0.s8 %v1053
      %v1055 = vlaneseq
      %v1056 = vshrl.u32 %v1055, 7
      %v1057 = vsub.s32 %v1054, %v1056
      %v1058 = vrot.slane %v1048, %v1057
      %v1060 = vunpack.c.l.s4 1966171168
      %v1061 = vunpack.c.0.s8 %v1060
      %v1062 = vlaneseq
      %v1063 = vshrl.u32 %v1062, 7
      %v1064 = vsub.s32 %v1061, %v1063
      %v1065 = vrot.slane %v1049, %v1064
      %v1067 = vunpack.c.l.s4 1966171168
      %v1068 = vunpack.c.0.s8 %v1067
      %v1069 = vlaneseq
      %v1070 = vshrl.u32 %v1069, 7
      %v1071 = vsub.s32 %v1068, %v1070
      %v1072 = vrot.slane %v1050, %v1071
      %v1074 = vunpack.c.l.s4 1966171168
      %v1075 = vunpack.c.0.s8 %v1074
      %v1076 = vlaneseq
      %v1077 = vshrl.u32 %v1076, 7
      %v1078 = vsub.s32 %v1075, %v1077
      %v1079 = vrot.slane %v1051, %v1078
      %v1080 = vcombine.low %v1058, %v1065
      %v1081 = vcombine.low %v1072, %v1079
      %v1083 = vunpack.c.l.s4 1966171168
      %v1084 = vunpack.c.0.s8 %v1083
      %v1085 = vlaneseq
      %v1086 = vshrl.u32 %v1085, 7
      %v1087 = vsub.s32 %v1084, %v1086
      %v1088 = vrot.slane %v1080, %v1087
      %v1090 = vunpack.c.l.s4 1966171168
      %v1091 = vunpack.c.0.s8 %v1090
      %v1092 = vlaneseq
      %v1093 = vshrl.u32 %v1092, 7
      %v1094 = vsub.s32 %v1091, %v1093
      %v1095 = vrot.slane %v1081, %v1094
      %v1096 = vcombine.low %v1088, %v1095
      %v1097 = vcombine.low %v485, %v499
      %v1098 = vcombine.low %v501, %v503
      %v1099 = vcombine.low %v517, %v541
      %v1100 = vcombine.low %v555, %v563
      %v1102 = vunpack.c.l.s4 1966171168
      %v1103 = vunpack.c.0.s8 %v1102
      %v1104 = vlaneseq
      %v1105 = vshrl.u32 %v1104, 7
      %v1106 = vsub.s32 %v1103, %v1105
      %v1107 = vrot.slane %v1097, %v1106
      %v1109 = vunpack.c.l.s4 1966171168
      %v1110 = vunpack.c.0.s8 %v1109
      %v1111 = vlaneseq
      %v1112 = vshrl.u32 %v1111, 7
      %v1113 = vsub.s32 %v1110, %v1112
      %v1114 = vrot.slane %v1098, %v1113
      %v1116 = vunpack.c.l.s4 1966171168
      %v1117 = vunpack.c.0.s8 %v1116
      %v1118 = vlaneseq
      %v1119 = vshrl.u32 %v1118, 7
      %v1120 = vsub.s32 %v1117, %v1119
      %v1121 = vrot.slane %v1099, %v1120
      %v1123 = vunpack.c.l.s4 1966171168
      %v1124 = vunpack.c.0.s8 %v1123
      %v1125 = vlaneseq
      %v1126 = vshrl.u32 %v1125, 7
      %v1127 = vsub.s32 %v1124, %v1126
      %v1128 = vrot.slane %v1100, %v1127
      %v1129 = vcombine.low %v1107, %v1114
      %v1130 = vcombine.low %v1121, %v1128
      %v1132 = vunpack.c.l.s4 1966171168
      %v1133 = vunpack.c.0.s8 %v1132
      %v1134 = vlaneseq
      %v1135 = vshrl.u32 %v1134, 7
      %v1136 = vsub.s32 %v1133, %v1135
      %v1137 = vrot.slane %v1129, %v1136
      %v1139 = vunpack.c.l.s4 1966171168
      %v1140 = vunpack.c.0.s8 %v1139
      %v1141 = vlaneseq
      %v1142 = vshrl.u32 %v1141, 7
      %v1143 = vsub.s32 %v1140, %v1142
      %v1144 = vrot.slane %v1130, %v1143
      %v1145 = vcombine.low %v1137, %v1144
      %v1146 = vcombine.low %v565, %v548
      %v1147 = vcombine.low %v562, %v564
      %v1148 = vcombine.low %v566, %v580
      %v1149 = vcombine.low %v604, %v618
      %v1151 = vunpack.c.l.s4 1966171168
      %v1152 = vunpack.c.0.s8 %v1151
      %v1153 = vlaneseq
      %v1154 = vshrl.u32 %v1153, 7
      %v1155 = vsub.s32 %v1152, %v1154
      %v1156 = vrot.slane %v1146, %v1155
      %v1158 = vunpack.c.l.s4 1966171168
      %v1159 = vunpack.c.0.s8 %v1158
      %v1160 = vlaneseq
      %v1161 = vshrl.u32 %v1160, 7
      %v1162 = vsub.s32 %v1159, %v1161
      %v1163 = vrot.slane %v1147, %v1162
      %v1165 = vunpack.c.l.s4 1966171168
      %v1166 = vunpack.c.0.s8 %v1165
      %v1167 = vlaneseq
      %v1168 = vshrl.u32 %v1167, 7
      %v1169 = vsub.s32 %v1166, %v1168
      %v1170 = vrot.slane %v1148, %v1169
      %v1172 = vunpack.c.l.s4 1966171168
      %v1173 = vunpack.c.0.s8 %v1172
      %v1174 = vlaneseq
      %v1175 = vshrl.u32 %v1174, 7
      %v1176 = vsub.s32 %v1173, %v1175
      %v1177 = vrot.slane %v1149, %v1176
      %v1178 = vcombine.low %v1156, %v1163
      %v1179 = vcombine.low %v1170, %v1177
      %v1181 = vunpack.c.l.s4 1966171168
      %v1182 = vunpack.c.0.s8 %v1181
      %v1183 = vlaneseq
      %v1184 = vshrl.u32 %v1183, 7
      %v1185 = vsub.s32 %v1182, %v1184
      %v1186 = vrot.slane %v1178, %v1185
      %v1188 = vunpack.c.l.s4 1966171168
      %v1189 = vunpack.c.0.s8 %v1188
      %v1190 = vlaneseq
      %v1191 = vshrl.u32 %v1190, 7
      %v1192 = vsub.s32 %v1189, %v1191
      %v1193 = vrot.slane %v1179, %v1192
      %v1194 = vcombine.low %v1186, %v1193
      %v1195 = vcombine.low %v626, %v628
      %v1196 = vcombine.low %v611, %v625
      %v1197 = vcombine.low %v627, %v629
      %v1198 = vcombine.low %v643, %v667
      %v1200 = vunpack.c.l.s4 1966171168
      %v1201 = vunpack.c.0.s8 %v1200
      %v1202 = vlaneseq
      %v1203 = vshrl.u32 %v1202, 7
      %v1204 = vsub.s32 %v1201, %v1203
      %v1205 = vrot.slane %v1195, %v1204
      %v1207 = vunpack.c.l.s4 1966171168
      %v1208 = vunpack.c.0.s8 %v1207
      %v1209 = vlaneseq
      %v1210 = vshrl.u32 %v1209, 7
      %v1211 = vsub.s32 %v1208, %v1210
      %v1212 = vrot.slane %v1196, %v1211
      %v1214 = vunpack.c.l.s4 1966171168
      %v1215 = vunpack.c.0.s8 %v1214
      %v1216 = vlaneseq
      %v1217 = vshrl.u32 %v1216, 7
      %v1218 = vsub.s32 %v1215, %v1217
      %v1219 = vrot.slane %v1197, %v1218
      %v1221 = vunpack.c.l.s4 1966171168
      %v1222 = vunpack.c.0.s8 %v1221
      %v1223 = vlaneseq
      %v1224 = vshrl.u32 %v1223, 7
      %v1225 = vsub.s32 %v1222, %v1224
      %v1226 = vrot.slane %v1198, %v1225
      %v1227 = vcombine.low %v1205, %v1212
      %v1228 = vcombine.low %v1219, %v1226
      %v1230 = vunpack.c.l.s4 1966171168
      %v1231 = vunpack.c.0.s8 %v1230
      %v1232 = vlaneseq
      %v1233 = vshrl.u32 %v1232, 7
      %v1234 = vsub.s32 %v1231, %v1233
      %v1235 = vrot.slane %v1227, %v1234
      %v1237 = vunpack.c.l.s4 1966171168
      %v1238 = vunpack.c.0.s8 %v1237
      %v1239 = vlaneseq
      %v1240 = vshrl.u32 %v1239, 7
      %v1241 = vsub.s32 %v1238, %v1240
      %v1242 = vrot.slane %v1228, %v1241
      %v1243 = vcombine.low %v1235, %v1242
      %v1244 = vcombine.low %v681, %v689
      %v1245 = vcombine.low %v691, %v674
      %v1246 = vcombine.low %v688, %v690
      %v1247 = vcombine.low %v692, %v706
      %v1249 = vunpack.c.l.s4 1966171168
      %v1250 = vunpack.c.0.s8 %v1249
      %v1251 = vlaneseq
      %v1252 = vshrl.u32 %v1251, 7
      %v1253 = vsub.s32 %v1250, %v1252
      %v1254 = vrot.slane %v1244, %v1253
      %v1256 = vunpack.c.l.s4 1966171168
      %v1257 = vunpack.c.0.s8 %v1256
      %v1258 = vlaneseq
      %v1259 = vshrl.u32 %v1258, 7
      %v1260 = vsub.s32 %v1257, %v1259
      %v1261 = vrot.slane %v1245, %v1260
      %v1263 = vunpack.c.l.s4 1966171168
      %v1264 = vunpack.c.0.s8 %v1263
      %v1265 = vlaneseq
      %v1266 = vshrl.u32 %v1265, 7
      %v1267 = vsub.s32 %v1264, %v1266
      %v1268 = vrot.slane %v1246, %v1267
      %v1270 = vunpack.c.l.s4 1966171168
      %v1271 = vunpack.c.0.s8 %v1270
      %v1272 = vlaneseq
      %v1273 = vshrl.u32 %v1272, 7
      %v1274 = vsub.s32 %v1271, %v1273
      %v1275 = vrot.slane %v1247, %v1274
      %v1276 = vcombine.low %v1254, %v1261
      %v1277 = vcombine.low %v1268, %v1275
      %v1279 = vunpack.c.l.s4 1966171168
      %v1280 = vunpack.c.0.s8 %v1279
      %v1281 = vlaneseq
      %v1282 = vshrl.u32 %v1281, 7
      %v1283 = vsub.s32 %v1280, %v1282
      %v1284 = vrot.slane %v1276, %v1283
      %v1286 = vunpack.c.l.s4 1966171168
      %v1287 = vunpack.c.0.s8 %v1286
      %v1288 = vlaneseq
      %v1289 = vshrl.u32 %v1288, 7
      %v1290 = vsub.s32 %v1287, %v1289
      %v1291 = vrot.slane %v1277, %v1290
      %v1292 = vcombine.low %v1284, %v1291
      %v1293 = vcombine.low %v730, %v744
      %v1294 = vcombine.low %v752, %v754
      %v1295 = vcombine.low %v737, %v751
      %v1296 = vcombine.low %v753, %v755
      %v1298 = vunpack.c.l.s4 1966171168
      %v1299 = vunpack.c.0.s8 %v1298
      %v1300 = vlaneseq
      %v1301 = vshrl.u32 %v1300, 7
      %v1302 = vsub.s32 %v1299, %v1301
      %v1303 = vrot.slane %v1293, %v1302
      %v1305 = vunpack.c.l.s4 1966171168
      %v1306 = vunpack.c.0.s8 %v1305
      %v1307 = vlaneseq
      %v1308 = vshrl.u32 %v1307, 7
      %v1309 = vsub.s32 %v1306, %v1308
      %v1310 = vrot.slane %v1294, %v1309
      %v1312 = vunpack.c.l.s4 1966171168
      %v1313 = vunpack.c.0.s8 %v1312
      %v1314 = vlaneseq
      %v1315 = vshrl.u32 %v1314, 7
      %v1316 = vsub.s32 %v1313, %v1315
      %v1317 = vrot.slane %v1295, %v1316
      %v1319 = vunpack.c.l.s4 1966171168
      %v1320 = vunpack.c.0.s8 %v1319
      %v1321 = vlaneseq
      %v1322 = vshrl.u32 %v1321, 7
      %v1323 = vsub.s32 %v1320, %v1322
      %v1324 = vrot.slane %v1296, %v1323
      %v1325 = vcombine.low %v1303, %v1310
      %v1326 = vcombine.low %v1317, %v1324
      %v1328 = vunpack.c.l.s4 1966171168
      %v1329 = vunpack.c.0.s8 %v1328
      %v1330 = vlaneseq
      %v1331 = vshrl.u32 %v1330, 7
      %v1332 = vsub.s32 %v1329, %v1331
      %v1333 = vrot.slane %v1325, %v1332
      %v1335 = vunpack.c.l.s4 1966171168
      %v1336 = vunpack.c.0.s8 %v1335
      %v1337 = vlaneseq
      %v1338 = vshrl.u32 %v1337, 7
      %v1339 = vsub.s32 %v1336, %v1338
      %v1340 = vrot.slane %v1326, %v1339
      %v1341 = vcombine.low %v1333, %v1340
      %v1343 = vunpack.c.l.s4 1966171168
      %v1344 = vunpack.c.0.s8 %v1343
      %v1345 = vlaneseq
      %v1346 = vshrl.u32 %v1345, 7
      %v1347 = vsub.s32 %v1344, %v1346
      %v1348 = vrot.slane %v769, %v1347
      %v1350 = vunpack.c.l.s4 1966171168
      %v1351 = vunpack.c.0.s8 %v1350
      %v1352 = vlaneseq
      %v1353 = vshrl.u32 %v1352, 7
      %v1354 = vsub.s32 %v1351, %v1353
      %v1355 = vrot.slane %v1348, %v1354
      %vm1367 = vcmask 130048
      %v1368 = vsel %vm1367, %v900, 0.0
      %v1369 = vsel %vm1367, %v949, 0.0
      %v1370 = vadd.f32 %v1368, %v1369
      %v1371 = vsel %vm1367, %v998, 0.0
      %v1372 = vadd.f32 %v1370, %v1371
      %v1373 = vsel %vm1367, %v1047, 0.0
      %v1374 = vadd.f32 %v1372, %v1373
      %v1375 = vsel %vm1367, %v1096, 0.0
      %v1376 = vadd.f32 %v1374, %v1375
      %v1377 = vsel %vm1367, %v1145, 0.0
      %v1378 = vadd.f32 %v1376, %v1377
      %v1379 = vsel %vm1367, %v1194, 0.0
      %v1380 = vadd.f32 %v1378, %v1379
      %v1381 = vsel %vm1367, %v1243, 0.0
      %v1382 = vadd.f32 %v1380, %v1381
      %v1383 = vsel %vm1367, %v1292, 0.0
      %v1384 = vadd.f32 %v1382, %v1383
      %v1385 = vsel %vm1367, %v1341, 0.0
      %v1386 = vadd.f32 %v1384, %v1385
      %vm1387 = vcmask 122880
      %v1388 = vsel %vm1387, %v1355, 0.0
      %v1389 = vadd.f32 %v1386, %v1388
      %v1390 = vrot.slane %v1389, 4
      %v1391 = vadd.f32 %v1389, %v1390
      %v1392 = vrot.slane %v1391, 2
      %v1393 = vadd.f32 %v1391, %v1392
      %v1394 = vrot.slane %v1393, 1
      %v1395 = vadd.f32 %v1393, %v1394
      %v1396 = vadd.f32 %v851, %v1395
      %1397 = vst.msk [vmem:[%s1] sm:$0x1] %vm1387, %v1396
      %v1398 = vld [vmem:[%s2] sm:$0x1]
      %v1399 = vmul.f32 %v226, %v226
      %v1400 = vmul.f32 %v240, %v240
      %v1401 = vmul.f32 %v248, %v248
      %v1402 = vmul.f32 %v250, %v250
      %v1403 = vmul.f32 %v233, %v233
      %v1404 = vmul.f32 %v247, %v247
      %v1405 = vmul.f32 %v249, %v249
      %v1406 = vmul.f32 %v251, %v251
      %v1407 = vmul.f32 %v265, %v265
      %v1408 = vmul.f32 %v289, %v289
      %v1409 = vmul.f32 %v303, %v303
      %v1410 = vmul.f32 %v311, %v311
      %v1411 = vmul.f32 %v313, %v313
      %v1412 = vmul.f32 %v296, %v296
      %v1413 = vmul.f32 %v310, %v310
      %v1414 = vmul.f32 %v312, %v312
      %v1415 = vmul.f32 %v314, %v314
      %v1416 = vmul.f32 %v328, %v328
      %v1417 = vmul.f32 %v352, %v352
      %v1418 = vmul.f32 %v366, %v366
      %v1419 = vmul.f32 %v374, %v374
      %v1420 = vmul.f32 %v376, %v376
      %v1421 = vmul.f32 %v359, %v359
      %v1422 = vmul.f32 %v373, %v373
      %v1423 = vmul.f32 %v375, %v375
      %v1424 = vmul.f32 %v377, %v377
      %v1425 = vmul.f32 %v391, %v391
      %v1426 = vmul.f32 %v415, %v415
      %v1427 = vmul.f32 %v429, %v429
      %v1428 = vmul.f32 %v437, %v437
      %v1429 = vmul.f32 %v439, %v439
      %v1430 = vmul.f32 %v422, %v422
      %v1431 = vmul.f32 %v436, %v436
      %v1432 = vmul.f32 %v438, %v438
      %v1433 = vmul.f32 %v440, %v440
      %v1434 = vmul.f32 %v454, %v454
      %v1435 = vmul.f32 %v478, %v478
      %v1436 = vmul.f32 %v492, %v492
      %v1437 = vmul.f32 %v500, %v500
      %v1438 = vmul.f32 %v502, %v502
      %v1439 = vmul.f32 %v485, %v485
      %v1440 = vmul.f32 %v499, %v499
      %v1441 = vmul.f32 %v501, %v501
      %v1442 = vmul.f32 %v503, %v503
      %v1443 = vmul.f32 %v517, %v517
      %v1444 = vmul.f32 %v541, %v541
      %v1445 = vmul.f32 %v555, %v555
      %v1446 = vmul.f32 %v563, %v563
      %v1447 = vmul.f32 %v565, %v565
      %v1448 = vmul.f32 %v548, %v548
      %v1449 = vmul.f32 %v562, %v562
      %v1450 = vmul.f32 %v564, %v564
      %v1451 = vmul.f32 %v566, %v566
      %v1452 = vmul.f32 %v580, %v580
      %v1453 = vmul.f32 %v604, %v604
      %v1454 = vmul.f32 %v618, %v618
      %v1455 = vmul.f32 %v626, %v626
      %v1456 = vmul.f32 %v628, %v628
      %v1457 = vmul.f32 %v611, %v611
      %v1458 = vmul.f32 %v625, %v625
      %v1459 = vmul.f32 %v627, %v627
      %v1460 = vmul.f32 %v629, %v629
      %v1461 = vmul.f32 %v643, %v643
      %v1462 = vmul.f32 %v667, %v667
      %v1463 = vmul.f32 %v681, %v681
      %v1464 = vmul.f32 %v689, %v689
      %v1465 = vmul.f32 %v691, %v691
      %v1466 = vmul.f32 %v674, %v674
      %v1467 = vmul.f32 %v688, %v688
      %v1468 = vmul.f32 %v690, %v690
      %v1469 = vmul.f32 %v692, %v692
      %v1470 = vmul.f32 %v706, %v706
      %v1471 = vmul.f32 %v730, %v730
      %v1472 = vmul.f32 %v744, %v744
      %v1473 = vmul.f32 %v752, %v752
      %v1474 = vmul.f32 %v754, %v754
      %v1475 = vmul.f32 %v737, %v737
      %v1476 = vmul.f32 %v751, %v751
      %v1477 = vmul.f32 %v753, %v753
      %v1478 = vmul.f32 %v755, %v755
      %v1479 = vmul.f32 %v769, %v769
      %v1561 = vcombine.low %v1399, %v1400
      %v1562 = vcombine.low %v1401, %v1402
      %v1563 = vcombine.low %v1403, %v1404
      %v1564 = vcombine.low %v1405, %v1406
      %v1566 = vunpack.c.l.s4 1966171168
      %v1567 = vunpack.c.0.s8 %v1566
      %v1568 = vlaneseq
      %v1569 = vshrl.u32 %v1568, 7
      %v1570 = vsub.s32 %v1567, %v1569
      %v1571 = vrot.slane %v1561, %v1570
      %v1573 = vunpack.c.l.s4 1966171168
      %v1574 = vunpack.c.0.s8 %v1573
      %v1575 = vlaneseq
      %v1576 = vshrl.u32 %v1575, 7
      %v1577 = vsub.s32 %v1574, %v1576
      %v1578 = vrot.slane %v1562, %v1577
      %v1580 = vunpack.c.l.s4 1966171168
      %v1581 = vunpack.c.0.s8 %v1580
      %v1582 = vlaneseq
      %v1583 = vshrl.u32 %v1582, 7
      %v1584 = vsub.s32 %v1581, %v1583
      %v1585 = vrot.slane %v1563, %v1584
      %v1587 = vunpack.c.l.s4 1966171168
      %v1588 = vunpack.c.0.s8 %v1587
      %v1589 = vlaneseq
      %v1590 = vshrl.u32 %v1589, 7
      %v1591 = vsub.s32 %v1588, %v1590
      %v1592 = vrot.slane %v1564, %v1591
      %v1593 = vcombine.low %v1571, %v1578
      %v1594 = vcombine.low %v1585, %v1592
      %v1596 = vunpack.c.l.s4 1966171168
      %v1597 = vunpack.c.0.s8 %v1596
      %v1598 = vlaneseq
      %v1599 = vshrl.u32 %v1598, 7
      %v1600 = vsub.s32 %v1597, %v1599
      %v1601 = vrot.slane %v1593, %v1600
      %v1603 = vunpack.c.l.s4 1966171168
      %v1604 = vunpack.c.0.s8 %v1603
      %v1605 = vlaneseq
      %v1606 = vshrl.u32 %v1605, 7
      %v1607 = vsub.s32 %v1604, %v1606
      %v1608 = vrot.slane %v1594, %v1607
      %v1609 = vcombine.low %v1601, %v1608
      %v1610 = vcombine.low %v1407, %v1408
      %v1611 = vcombine.low %v1409, %v1410
      %v1612 = vcombine.low %v1411, %v1412
      %v1613 = vcombine.low %v1413, %v1414
      %v1615 = vunpack.c.l.s4 1966171168
      %v1616 = vunpack.c.0.s8 %v1615
      %v1617 = vlaneseq
      %v1618 = vshrl.u32 %v1617, 7
      %v1619 = vsub.s32 %v1616, %v1618
      %v1620 = vrot.slane %v1610, %v1619
      %v1622 = vunpack.c.l.s4 1966171168
      %v1623 = vunpack.c.0.s8 %v1622
      %v1624 = vlaneseq
      %v1625 = vshrl.u32 %v1624, 7
      %v1626 = vsub.s32 %v1623, %v1625
      %v1627 = vrot.slane %v1611, %v1626
      %v1629 = vunpack.c.l.s4 1966171168
      %v1630 = vunpack.c.0.s8 %v1629
      %v1631 = vlaneseq
      %v1632 = vshrl.u32 %v1631, 7
      %v1633 = vsub.s32 %v1630, %v1632
      %v1634 = vrot.slane %v1612, %v1633
      %v1636 = vunpack.c.l.s4 1966171168
      %v1637 = vunpack.c.0.s8 %v1636
      %v1638 = vlaneseq
      %v1639 = vshrl.u32 %v1638, 7
      %v1640 = vsub.s32 %v1637, %v1639
      %v1641 = vrot.slane %v1613, %v1640
      %v1642 = vcombine.low %v1620, %v1627
      %v1643 = vcombine.low %v1634, %v1641
      %v1645 = vunpack.c.l.s4 1966171168
      %v1646 = vunpack.c.0.s8 %v1645
      %v1647 = vlaneseq
      %v1648 = vshrl.u32 %v1647, 7
      %v1649 = vsub.s32 %v1646, %v1648
      %v1650 = vrot.slane %v1642, %v1649
      %v1652 = vunpack.c.l.s4 1966171168
      %v1653 = vunpack.c.0.s8 %v1652
      %v1654 = vlaneseq
      %v1655 = vshrl.u32 %v1654, 7
      %v1656 = vsub.s32 %v1653, %v1655
      %v1657 = vrot.slane %v1643, %v1656
      %v1658 = vcombine.low %v1650, %v1657
      %v1659 = vcombine.low %v1415, %v1416
      %v1660 = vcombine.low %v1417, %v1418
      %v1661 = vcombine.low %v1419, %v1420
      %v1662 = vcombine.low %v1421, %v1422
      %v1664 = vunpack.c.l.s4 1966171168
      %v1665 = vunpack.c.0.s8 %v1664
      %v1666 = vlaneseq
      %v1667 = vshrl.u32 %v1666, 7
      %v1668 = vsub.s32 %v1665, %v1667
      %v1669 = vrot.slane %v1659, %v1668
      %v1671 = vunpack.c.l.s4 1966171168
      %v1672 = vunpack.c.0.s8 %v1671
      %v1673 = vlaneseq
      %v1674 = vshrl.u32 %v1673, 7
      %v1675 = vsub.s32 %v1672, %v1674
      %v1676 = vrot.slane %v1660, %v1675
      %v1678 = vunpack.c.l.s4 1966171168
      %v1679 = vunpack.c.0.s8 %v1678
      %v1680 = vlaneseq
      %v1681 = vshrl.u32 %v1680, 7
      %v1682 = vsub.s32 %v1679, %v1681
      %v1683 = vrot.slane %v1661, %v1682
      %v1685 = vunpack.c.l.s4 1966171168
      %v1686 = vunpack.c.0.s8 %v1685
      %v1687 = vlaneseq
      %v1688 = vshrl.u32 %v1687, 7
      %v1689 = vsub.s32 %v1686, %v1688
      %v1690 = vrot.slane %v1662, %v1689
      %v1691 = vcombine.low %v1669, %v1676
      %v1692 = vcombine.low %v1683, %v1690
      %v1694 = vunpack.c.l.s4 1966171168
      %v1695 = vunpack.c.0.s8 %v1694
      %v1696 = vlaneseq
      %v1697 = vshrl.u32 %v1696, 7
      %v1698 = vsub.s32 %v1695, %v1697
      %v1699 = vrot.slane %v1691, %v1698
      %v1701 = vunpack.c.l.s4 1966171168
      %v1702 = vunpack.c.0.s8 %v1701
      %v1703 = vlaneseq
      %v1704 = vshrl.u32 %v1703, 7
      %v1705 = vsub.s32 %v1702, %v1704
      %v1706 = vrot.slane %v1692, %v1705
      %v1707 = vcombine.low %v1699, %v1706
      %v1708 = vcombine.low %v1423, %v1424
      %v1709 = vcombine.low %v1425, %v1426
      %v1710 = vcombine.low %v1427, %v1428
      %v1711 = vcombine.low %v1429, %v1430
      %v1713 = vunpack.c.l.s4 1966171168
      %v1714 = vunpack.c.0.s8 %v1713
      %v1715 = vlaneseq
      %v1716 = vshrl.u32 %v1715, 7
      %v1717 = vsub.s32 %v1714, %v1716
      %v1718 = vrot.slane %v1708, %v1717
      %v1720 = vunpack.c.l.s4 1966171168
      %v1721 = vunpack.c.0.s8 %v1720
      %v1722 = vlaneseq
      %v1723 = vshrl.u32 %v1722, 7
      %v1724 = vsub.s32 %v1721, %v1723
      %v1725 = vrot.slane %v1709, %v1724
      %v1727 = vunpack.c.l.s4 1966171168
      %v1728 = vunpack.c.0.s8 %v1727
      %v1729 = vlaneseq
      %v1730 = vshrl.u32 %v1729, 7
      %v1731 = vsub.s32 %v1728, %v1730
      %v1732 = vrot.slane %v1710, %v1731
      %v1734 = vunpack.c.l.s4 1966171168
      %v1735 = vunpack.c.0.s8 %v1734
      %v1736 = vlaneseq
      %v1737 = vshrl.u32 %v1736, 7
      %v1738 = vsub.s32 %v1735, %v1737
      %v1739 = vrot.slane %v1711, %v1738
      %v1740 = vcombine.low %v1718, %v1725
      %v1741 = vcombine.low %v1732, %v1739
      %v1743 = vunpack.c.l.s4 1966171168
      %v1744 = vunpack.c.0.s8 %v1743
      %v1745 = vlaneseq
      %v1746 = vshrl.u32 %v1745, 7
      %v1747 = vsub.s32 %v1744, %v1746
      %v1748 = vrot.slane %v1740, %v1747
      %v1750 = vunpack.c.l.s4 1966171168
      %v1751 = vunpack.c.0.s8 %v1750
      %v1752 = vlaneseq
      %v1753 = vshrl.u32 %v1752, 7
      %v1754 = vsub.s32 %v1751, %v1753
      %v1755 = vrot.slane %v1741, %v1754
      %v1756 = vcombine.low %v1748, %v1755
      %v1757 = vcombine.low %v1431, %v1432
      %v1758 = vcombine.low %v1433, %v1434
      %v1759 = vcombine.low %v1435, %v1436
      %v1760 = vcombine.low %v1437, %v1438
      %v1762 = vunpack.c.l.s4 1966171168
      %v1763 = vunpack.c.0.s8 %v1762
      %v1764 = vlaneseq
      %v1765 = vshrl.u32 %v1764, 7
      %v1766 = vsub.s32 %v1763, %v1765
      %v1767 = vrot.slane %v1757, %v1766
      %v1769 = vunpack.c.l.s4 1966171168
      %v1770 = vunpack.c.0.s8 %v1769
      %v1771 = vlaneseq
      %v1772 = vshrl.u32 %v1771, 7
      %v1773 = vsub.s32 %v1770, %v1772
      %v1774 = vrot.slane %v1758, %v1773
      %v1776 = vunpack.c.l.s4 1966171168
      %v1777 = vunpack.c.0.s8 %v1776
      %v1778 = vlaneseq
      %v1779 = vshrl.u32 %v1778, 7
      %v1780 = vsub.s32 %v1777, %v1779
      %v1781 = vrot.slane %v1759, %v1780
      %v1783 = vunpack.c.l.s4 1966171168
      %v1784 = vunpack.c.0.s8 %v1783
      %v1785 = vlaneseq
      %v1786 = vshrl.u32 %v1785, 7
      %v1787 = vsub.s32 %v1784, %v1786
      %v1788 = vrot.slane %v1760, %v1787
      %v1789 = vcombine.low %v1767, %v1774
      %v1790 = vcombine.low %v1781, %v1788
      %v1792 = vunpack.c.l.s4 1966171168
      %v1793 = vunpack.c.0.s8 %v1792
      %v1794 = vlaneseq
      %v1795 = vshrl.u32 %v1794, 7
      %v1796 = vsub.s32 %v1793, %v1795
      %v1797 = vrot.slane %v1789, %v1796
      %v1799 = vunpack.c.l.s4 1966171168
      %v1800 = vunpack.c.0.s8 %v1799
      %v1801 = vlaneseq
      %v1802 = vshrl.u32 %v1801, 7
      %v1803 = vsub.s32 %v1800, %v1802
      %v1804 = vrot.slane %v1790, %v1803
      %v1805 = vcombine.low %v1797, %v1804
      %v1806 = vcombine.low %v1439, %v1440
      %v1807 = vcombine.low %v1441, %v1442
      %v1808 = vcombine.low %v1443, %v1444
      %v1809 = vcombine.low %v1445, %v1446
      %v1811 = vunpack.c.l.s4 1966171168
      %v1812 = vunpack.c.0.s8 %v1811
      %v1813 = vlaneseq
      %v1814 = vshrl.u32 %v1813, 7
      %v1815 = vsub.s32 %v1812, %v1814
      %v1816 = vrot.slane %v1806, %v1815
      %v1818 = vunpack.c.l.s4 1966171168
      %v1819 = vunpack.c.0.s8 %v1818
      %v1820 = vlaneseq
      %v1821 = vshrl.u32 %v1820, 7
      %v1822 = vsub.s32 %v1819, %v1821
      %v1823 = vrot.slane %v1807, %v1822
      %v1825 = vunpack.c.l.s4 1966171168
      %v1826 = vunpack.c.0.s8 %v1825
      %v1827 = vlaneseq
      %v1828 = vshrl.u32 %v1827, 7
      %v1829 = vsub.s32 %v1826, %v1828
      %v1830 = vrot.slane %v1808, %v1829
      %v1832 = vunpack.c.l.s4 1966171168
      %v1833 = vunpack.c.0.s8 %v1832
      %v1834 = vlaneseq
      %v1835 = vshrl.u32 %v1834, 7
      %v1836 = vsub.s32 %v1833, %v1835
      %v1837 = vrot.slane %v1809, %v1836
      %v1838 = vcombine.low %v1816, %v1823
      %v1839 = vcombine.low %v1830, %v1837
      %v1841 = vunpack.c.l.s4 1966171168
      %v1842 = vunpack.c.0.s8 %v1841
      %v1843 = vlaneseq
      %v1844 = vshrl.u32 %v1843, 7
      %v1845 = vsub.s32 %v1842, %v1844
      %v1846 = vrot.slane %v1838, %v1845
      %v1848 = vunpack.c.l.s4 1966171168
      %v1849 = vunpack.c.0.s8 %v1848
      %v1850 = vlaneseq
      %v1851 = vshrl.u32 %v1850, 7
      %v1852 = vsub.s32 %v1849, %v1851
      %v1853 = vrot.slane %v1839, %v1852
      %v1854 = vcombine.low %v1846, %v1853
      %v1855 = vcombine.low %v1447, %v1448
      %v1856 = vcombine.low %v1449, %v1450
      %v1857 = vcombine.low %v1451, %v1452
      %v1858 = vcombine.low %v1453, %v1454
      %v1860 = vunpack.c.l.s4 1966171168
      %v1861 = vunpack.c.0.s8 %v1860
      %v1862 = vlaneseq
      %v1863 = vshrl.u32 %v1862, 7
      %v1864 = vsub.s32 %v1861, %v1863
      %v1865 = vrot.slane %v1855, %v1864
      %v1867 = vunpack.c.l.s4 1966171168
      %v1868 = vunpack.c.0.s8 %v1867
      %v1869 = vlaneseq
      %v1870 = vshrl.u32 %v1869, 7
      %v1871 = vsub.s32 %v1868, %v1870
      %v1872 = vrot.slane %v1856, %v1871
      %v1874 = vunpack.c.l.s4 1966171168
      %v1875 = vunpack.c.0.s8 %v1874
      %v1876 = vlaneseq
      %v1877 = vshrl.u32 %v1876, 7
      %v1878 = vsub.s32 %v1875, %v1877
      %v1879 = vrot.slane %v1857, %v1878
      %v1881 = vunpack.c.l.s4 1966171168
      %v1882 = vunpack.c.0.s8 %v1881
      %v1883 = vlaneseq
      %v1884 = vshrl.u32 %v1883, 7
      %v1885 = vsub.s32 %v1882, %v1884
      %v1886 = vrot.slane %v1858, %v1885
      %v1887 = vcombine.low %v1865, %v1872
      %v1888 = vcombine.low %v1879, %v1886
      %v1890 = vunpack.c.l.s4 1966171168
      %v1891 = vunpack.c.0.s8 %v1890
      %v1892 = vlaneseq
      %v1893 = vshrl.u32 %v1892, 7
      %v1894 = vsub.s32 %v1891, %v1893
      %v1895 = vrot.slane %v1887, %v1894
      %v1897 = vunpack.c.l.s4 1966171168
      %v1898 = vunpack.c.0.s8 %v1897
      %v1899 = vlaneseq
      %v1900 = vshrl.u32 %v1899, 7
      %v1901 = vsub.s32 %v1898, %v1900
      %v1902 = vrot.slane %v1888, %v1901
      %v1903 = vcombine.low %v1895, %v1902
      %v1904 = vcombine.low %v1455, %v1456
      %v1905 = vcombine.low %v1457, %v1458
      %v1906 = vcombine.low %v1459, %v1460
      %v1907 = vcombine.low %v1461, %v1462
      %v1909 = vunpack.c.l.s4 1966171168
      %v1910 = vunpack.c.0.s8 %v1909
      %v1911 = vlaneseq
      %v1912 = vshrl.u32 %v1911, 7
      %v1913 = vsub.s32 %v1910, %v1912
      %v1914 = vrot.slane %v1904, %v1913
      %v1916 = vunpack.c.l.s4 1966171168
      %v1917 = vunpack.c.0.s8 %v1916
      %v1918 = vlaneseq
      %v1919 = vshrl.u32 %v1918, 7
      %v1920 = vsub.s32 %v1917, %v1919
      %v1921 = vrot.slane %v1905, %v1920
      %v1923 = vunpack.c.l.s4 1966171168
      %v1924 = vunpack.c.0.s8 %v1923
      %v1925 = vlaneseq
      %v1926 = vshrl.u32 %v1925, 7
      %v1927 = vsub.s32 %v1924, %v1926
      %v1928 = vrot.slane %v1906, %v1927
      %v1930 = vunpack.c.l.s4 1966171168
      %v1931 = vunpack.c.0.s8 %v1930
      %v1932 = vlaneseq
      %v1933 = vshrl.u32 %v1932, 7
      %v1934 = vsub.s32 %v1931, %v1933
      %v1935 = vrot.slane %v1907, %v1934
      %v1936 = vcombine.low %v1914, %v1921
      %v1937 = vcombine.low %v1928, %v1935
      %v1939 = vunpack.c.l.s4 1966171168
      %v1940 = vunpack.c.0.s8 %v1939
      %v1941 = vlaneseq
      %v1942 = vshrl.u32 %v1941, 7
      %v1943 = vsub.s32 %v1940, %v1942
      %v1944 = vrot.slane %v1936, %v1943
      %v1946 = vunpack.c.l.s4 1966171168
      %v1947 = vunpack.c.0.s8 %v1946
      %v1948 = vlaneseq
      %v1949 = vshrl.u32 %v1948, 7
      %v1950 = vsub.s32 %v1947, %v1949
      %v1951 = vrot.slane %v1937, %v1950
      %v1952 = vcombine.low %v1944, %v1951
      %v1953 = vcombine.low %v1463, %v1464
      %v1954 = vcombine.low %v1465, %v1466
      %v1955 = vcombine.low %v1467, %v1468
      %v1956 = vcombine.low %v1469, %v1470
      %v1958 = vunpack.c.l.s4 1966171168
      %v1959 = vunpack.c.0.s8 %v1958
      %v1960 = vlaneseq
      %v1961 = vshrl.u32 %v1960, 7
      %v1962 = vsub.s32 %v1959, %v1961
      %v1963 = vrot.slane %v1953, %v1962
      %v1965 = vunpack.c.l.s4 1966171168
      %v1966 = vunpack.c.0.s8 %v1965
      %v1967 = vlaneseq
      %v1968 = vshrl.u32 %v1967, 7
      %v1969 = vsub.s32 %v1966, %v1968
      %v1970 = vrot.slane %v1954, %v1969
      %v1972 = vunpack.c.l.s4 1966171168
      %v1973 = vunpack.c.0.s8 %v1972
      %v1974 = vlaneseq
      %v1975 = vshrl.u32 %v1974, 7
      %v1976 = vsub.s32 %v1973, %v1975
      %v1977 = vrot.slane %v1955, %v1976
      %v1979 = vunpack.c.l.s4 1966171168
      %v1980 = vunpack.c.0.s8 %v1979
      %v1981 = vlaneseq
      %v1982 = vshrl.u32 %v1981, 7
      %v1983 = vsub.s32 %v1980, %v1982
      %v1984 = vrot.slane %v1956, %v1983
      %v1985 = vcombine.low %v1963, %v1970
      %v1986 = vcombine.low %v1977, %v1984
      %v1988 = vunpack.c.l.s4 1966171168
      %v1989 = vunpack.c.0.s8 %v1988
      %v1990 = vlaneseq
      %v1991 = vshrl.u32 %v1990, 7
      %v1992 = vsub.s32 %v1989, %v1991
      %v1993 = vrot.slane %v1985, %v1992
      %v1995 = vunpack.c.l.s4 1966171168
      %v1996 = vunpack.c.0.s8 %v1995
      %v1997 = vlaneseq
      %v1998 = vshrl.u32 %v1997, 7
      %v1999 = vsub.s32 %v1996, %v1998
      %v2000 = vrot.slane %v1986, %v1999
      %v2001 = vcombine.low %v1993, %v2000
      %v2002 = vcombine.low %v1471, %v1472
      %v2003 = vcombine.low %v1473, %v1474
      %v2004 = vcombine.low %v1475, %v1476
      %v2005 = vcombine.low %v1477, %v1478
      %v2007 = vunpack.c.l.s4 1966171168
      %v2008 = vunpack.c.0.s8 %v2007
      %v2009 = vlaneseq
      %v2010 = vshrl.u32 %v2009, 7
      %v2011 = vsub.s32 %v2008, %v2010
      %v2012 = vrot.slane %v2002, %v2011
      %v2014 = vunpack.c.l.s4 1966171168
      %v2015 = vunpack.c.0.s8 %v2014
      %v2016 = vlaneseq
      %v2017 = vshrl.u32 %v2016, 7
      %v2018 = vsub.s32 %v2015, %v2017
      %v2019 = vrot.slane %v2003, %v2018
      %v2021 = vunpack.c.l.s4 1966171168
      %v2022 = vunpack.c.0.s8 %v2021
      %v2023 = vlaneseq
      %v2024 = vshrl.u32 %v2023, 7
      %v2025 = vsub.s32 %v2022, %v2024
      %v2026 = vrot.slane %v2004, %v2025
      %v2028 = vunpack.c.l.s4 1966171168
      %v2029 = vunpack.c.0.s8 %v2028
      %v2030 = vlaneseq
      %v2031 = vshrl.u32 %v2030, 7
      %v2032 = vsub.s32 %v2029, %v2031
      %v2033 = vrot.slane %v2005, %v2032
      %v2034 = vcombine.low %v2012, %v2019
      %v2035 = vcombine.low %v2026, %v2033
      %v2037 = vunpack.c.l.s4 1966171168
      %v2038 = vunpack.c.0.s8 %v2037
      %v2039 = vlaneseq
      %v2040 = vshrl.u32 %v2039, 7
      %v2041 = vsub.s32 %v2038, %v2040
      %v2042 = vrot.slane %v2034, %v2041
      %v2044 = vunpack.c.l.s4 1966171168
      %v2045 = vunpack.c.0.s8 %v2044
      %v2046 = vlaneseq
      %v2047 = vshrl.u32 %v2046, 7
      %v2048 = vsub.s32 %v2045, %v2047
      %v2049 = vrot.slane %v2035, %v2048
      %v2050 = vcombine.low %v2042, %v2049
      %v2052 = vunpack.c.l.s4 1966171168
      %v2053 = vunpack.c.0.s8 %v2052
      %v2054 = vlaneseq
      %v2055 = vshrl.u32 %v2054, 7
      %v2056 = vsub.s32 %v2053, %v2055
      %v2057 = vrot.slane %v1479, %v2056
      %v2059 = vunpack.c.l.s4 1966171168
      %v2060 = vunpack.c.0.s8 %v2059
      %v2061 = vlaneseq
      %v2062 = vshrl.u32 %v2061, 7
      %v2063 = vsub.s32 %v2060, %v2062
      %v2064 = vrot.slane %v2057, %v2063
      %v2076 = vsel %vm1367, %v1609, 0.0
      %v2077 = vsel %vm1367, %v1658, 0.0
      %v2078 = vadd.f32 %v2076, %v2077
      %v2079 = vsel %vm1367, %v1707, 0.0
      %v2080 = vadd.f32 %v2078, %v2079
      %v2081 = vsel %vm1367, %v1756, 0.0
      %v2082 = vadd.f32 %v2080, %v2081
      %v2083 = vsel %vm1367, %v1805, 0.0
      %v2084 = vadd.f32 %v2082, %v2083
      %v2085 = vsel %vm1367, %v1854, 0.0
      %v2086 = vadd.f32 %v2084, %v2085
      %v2087 = vsel %vm1367, %v1903, 0.0
      %v2088 = vadd.f32 %v2086, %v2087
      %v2089 = vsel %vm1367, %v1952, 0.0
      %v2090 = vadd.f32 %v2088, %v2089
      %v2091 = vsel %vm1367, %v2001, 0.0
      %v2092 = vadd.f32 %v2090, %v2091
      %v2093 = vsel %vm1367, %v2050, 0.0
      %v2094 = vadd.f32 %v2092, %v2093
      %v2095 = vsel %vm1387, %v2064, 0.0
      %v2096 = vadd.f32 %v2094, %v2095
      %v2097 = vrot.slane %v2096, 4
      %v2098 = vadd.f32 %v2096, %v2097
      %v2099 = vrot.slane %v2098, 2
      %v2100 = vadd.f32 %v2098, %v2099
      %v2101 = vrot.slane %v2100, 1
      %v2102 = vadd.f32 %v2100, %v2101
      %v2103 = vadd.f32 %v1398, %v2102
      %2104 = vst.msk [vmem:[%s2] sm:$0x1] %vm1387, %v2103
      // Predicated region
      $region29: #{upsample_forward.2} parent=23 // pred_check
        %p2105 = pneg %p67
      $region30: #{upsample_forward.2} parent=23 // pred_check_branch
        %2107 = sbr.rel (%p2105) target = $region32
      $region31: #{upsample_forward.2} parent=23 // pred_region
        _
      $region32: #{upsample_forward.2} parent=23 // pred_fallthru
        _
      // Predicated region
      $region33: #{upsample_forward.2} parent=23 // pred_check
        %p2108 = pneg %p88
      $region34: #{upsample_forward.2} parent=23 // pred_check_branch
        %2110 = sbr.rel (%p2108) target = $region36
      $region35: #{upsample_forward.2} parent=23 // pred_region
        _
      $region36: #{upsample_forward.2} parent=23 // pred_fallthru
        _
      // Predicated region
      $region37: #{upsample_forward.2} parent=23 // pred_check
        %p2111 = pneg %p67
      $region38: #{upsample_forward.2} parent=23 // pred_check_branch
        %2113 = sbr.rel (%p2111) target = $region40
      $region39: #{upsample_forward.2} parent=23 // pred_region
        _
      $region40: #{upsample_forward.2} parent=23 // pred_fallthru
        _
      // Predicated region
      $region41: #{upsample_forward.2} parent=23 // pred_check
        %p2114 = pneg %p88
      $region42: #{upsample_forward.2} parent=23 // pred_check_branch
        %2116 = sbr.rel (%p2114) target = $region44
      $region43: #{upsample_forward.2} parent=23 // pred_region
        _
      $region44: #{upsample_forward.2} parent=23 // pred_fallthru
        _
    $region24: #{upsample_forward.2} parent=5 // pred_fallthru
      _
    %p2117 = scmp.le.s32.totalorder 2, %s9
    // Predicated region
    $region45: #{upsample_forward.2} parent=5 // pred_check
      %p2118 = pneg %p2117
    $region46: #{upsample_forward.2} parent=5 // pred_check_branch
      %2120 = sbr.rel (%p2118) target = $region48
    $region47: #{upsample_forward.2} parent=5 // pred_region
      %s2121 = ssub.s32 %s9, 2
    $region48: #{upsample_forward.2} parent=5 // pred_fallthru
      _
  $region6: #{upsample_forward.2} parent=0 // loop_footer
    %s13 = sadd.s32 1, %s9
  $region7: #{upsample_forward.2} parent=0 // loop_footer_branch
    %8 = sbr.rel target = $region3
  $region8: #{upsample_forward.2} parent=0 // loop_exit
    _

// kernel: upsample_forward.3
$region0: #{upsample_forward.3}
  #allocation0 [shape = 'u32[]', space=smem, size = 0x4, offset = 0x4, fixed_abs, tag = 'smem constant byte address 0x4 - core index']
  #allocation1 [shape = 'u32[144,128]{1,0:T(1,128)}', space=vmem, size = 0x12000, scoped, tag = 'internal scratch']
  %s0 = inlined_call_operand.vmem [shape: f32[2,9,9,16], index: 0, kind: input, shape index: {}, may-alias: {0,1}]
  %s1 = inlined_call_operand.vmem [shape: f32[2,9,9,16], index: 1, kind: input, shape index: {}, may-alias: {0,1}]
  %s2 = inlined_call_operand.vmem [shape: f32[1,16], index: 2, kind: input, shape index: {}]
  %s3 = inlined_call_operand.vmem [shape: f32[1,16], index: 3, kind: input, shape index: {}]
  %s4 = inlined_call_operand.vmem [shape: bf16[4,16,8], index: 4, kind: input, shape index: {}]
  %s5 = inlined_call_operand.vmem [shape: f32[1,8], index: 5, kind: input, shape index: {}]
  %s6 = inlined_call_operand.vmem [shape: f32[2,8,8,8], index: 6, kind: output, shape index: {}]
  %s7 = sld [smem:[#allocation0]]
  $region57: #{upsample_forward.3} parent=0
    _
  %s9 = ssub.s32 1, %s7
  %s10 = scalar_select 0, %s9, %s7
  loop: start=0, step=1, limit=4
  $region2: #{upsample_forward.3} parent=0 // loop_pre_header
    _
  $region3: #{upsample_forward.3} parent=0 // loop_header
    %s12 = sphi 0, %s16
    %p13 = scmp.ge.s32.totalorder %s12, 4
    %s19 = sphi 0, %s31
    %s20 = sphi 0, %s27
    %s21 = sphi 0, %s19
    %s22 = sphi 0, %s20
    %s23 = sphi 0, %s21
    %s24 = sphi 0, %s22
    %s36 = sphi 0, %s38
    %s39 = sphi 0, %s36
    %s40 = sphi 0, %s39
    %s56 = sphi 0, %s40
    %s68 = sphi 0, %s70
    %s71 = sphi 0, %s68
    %s72 = sphi 0, %s71
    %s88 = sphi 0, %s72
    %s92 = sphi 0, %s92
    %s94 = sphi 0, %s92
    %s95 = sphi 0, %s94
    %s109 = sphi 0, %s95
    %s113 = sphi 0, %s113
    %s115 = sphi 0, %s113
    %s116 = sphi 0, %s115
    %s130 = sphi 0, %s116
    %s134 = sphi 0, %s134
    %s136 = sphi 0, %s134
    %s137 = sphi 0, %s136
    %s151 = sphi 0, %s137
    %s155 = sphi 0, %s155
    %s157 = sphi 0, %s155
    %s158 = sphi 0, %s157
    %s172 = sphi 0, %s158
    %s180 = sphi 0, %s182
    %s183 = sphi 0, %s180
    %s184 = sphi 0, %s183
    %s200 = sphi 0, %s184
  $region4: #{upsample_forward.3} parent=0 // loop_header_branch
    %15 = sbr.rel (%p13) target = $region8
  $region5: #{upsample_forward.3} parent=0 // loop_body
    %s17 = ssub.s32 %s12, 1
    %s18 = ssub.s32 %s12, 2
    %s25 = sadd.s32 1, %s20
    %p26 = scmp.ge.s32.totalorder %s25, 1
    %s27 = scalar_select %p26, 0, %s25
    %s28 = sadd.s32 1, %s19
    %s29 = scalar_select %p26, %s28, %s19
    %p30 = scmp.ge.s32.totalorder %s29, 2
    %s31 = scalar_select %p30, 0, %s29
    %s32 = ssub.s32 %s19, %s31
    %s33 = ssub.s32 %s20, %s27
    %s34 = sor.u32 %s32, %s33
    %p35 = scmp.eq.s32.totalorder %s34, 0
    %s37 = sadd.s32 %s36, 1
    %s38 = scalar_select %p35, %s36, %s37
    %p41 = pneg %p35
    %p42 = scmp.eq.s32.totalorder %s12, 1
    %p43 = por %p41, %p42
    %p44 = scmp.ne.s32.totalorder %s36, %s39
    %p45 = scmp.eq.s32.totalorder %s12, 0
    %p46 = por %p44, %p45
    %p47 = scmp.ne.s32.totalorder %s36, %s39
    %p48 = scmp.eq.s32.totalorder %s17, 1
    %p49 = por %p47, %p48
    %p50 = scmp.ne.s32.totalorder %s39, %s40
    %p51 = scmp.eq.s32.totalorder %s17, 0
    %p52 = por %p50, %p51
    %p53 = scmp.ne.s32.totalorder %s39, %s40
    %p54 = scmp.eq.s32.totalorder %s18, 1
    %p55 = por %p53, %p54
    %p57 = scmp.ne.s32.totalorder %s40, %s56
    %p58 = scmp.eq.s32.totalorder %s18, 0
    %p59 = por %p57, %p58
    %s60 = smul.u32 %s20, 8
    %s61 = sadd.s32 %s60, 8
    %s62 = smul.u32 %s27, 8
    %s63 = sadd.s32 %s62, 8
    %s64 = ssub.s32 %s19, %s31
    %s65 = ssub.s32 %s61, %s63
    %s66 = sor.u32 %s64, %s65
    %p67 = scmp.eq.s32.totalorder %s66, 0
    %s69 = sadd.s32 %s68, 1
    %s70 = scalar_select %p67, %s68, %s69
    %p73 = pneg %p67
    %p74 = scmp.eq.s32.totalorder %s12, 1
    %p75 = por %p73, %p74
    %p76 = scmp.ne.s32.totalorder %s68, %s71
    %p77 = scmp.eq.s32.totalorder %s12, 0
    %p78 = por %p76, %p77
    %p79 = scmp.ne.s32.totalorder %s68, %s71
    %p80 = scmp.eq.s32.totalorder %s17, 1
    %p81 = por %p79, %p80
    %p82 = scmp.ne.s32.totalorder %s71, %s72
    %p83 = scmp.eq.s32.totalorder %s17, 0
    %p84 = por %p82, %p83
    %p85 = scmp.ne.s32.totalorder %s71, %s72
    %p86 = scmp.eq.s32.totalorder %s18, 1
    %p87 = por %p85, %p86
    %p89 = scmp.ne.s32.totalorder %s72, %s88
    %p90 = scmp.eq.s32.totalorder %s18, 0
    %p91 = por %p89, %p90
    %s93 = sadd.s32 %s92, 1
    %p96 = scmp.eq.s32.totalorder %s12, 1
    %p97 = scmp.ne.s32.totalorder %s92, %s94
    %p98 = scmp.eq.s32.totalorder %s12, 0
    %p99 = por %p97, %p98
    %p100 = scmp.ne.s32.totalorder %s92, %s94
    %p101 = scmp.eq.s32.totalorder %s17, 1
    %p102 = por %p100, %p101
    %p103 = scmp.ne.s32.totalorder %s94, %s95
    %p104 = scmp.eq.s32.totalorder %s17, 0
    %p105 = por %p103, %p104
    %p106 = scmp.ne.s32.totalorder %s94, %s95
    %p107 = scmp.eq.s32.totalorder %s18, 1
    %p108 = por %p106, %p107
    %p110 = scmp.ne.s32.totalorder %s95, %s109
    %p111 = scmp.eq.s32.totalorder %s18, 0
    %p112 = por %p110, %p111
    %s114 = sadd.s32 %s113, 1
    %p117 = scmp.eq.s32.totalorder %s12, 1
    %p118 = scmp.ne.s32.totalorder %s113, %s115
    %p119 = scmp.eq.s32.totalorder %s12, 0
    %p120 = por %p118, %p119
    %p121 = scmp.ne.s32.totalorder %s113, %s115
    %p122 = scmp.eq.s32.totalorder %s17, 1
    %p123 = por %p121, %p122
    %p124 = scmp.ne.s32.totalorder %s115, %s116
    %p125 = scmp.eq.s32.totalorder %s17, 0
    %p126 = por %p124, %p125
    %p127 = scmp.ne.s32.totalorder %s115, %s116
    %p128 = scmp.eq.s32.totalorder %s18, 1
    %p129 = por %p127, %p128
    %p131 = scmp.ne.s32.totalorder %s116, %s130
    %p132 = scmp.eq.s32.totalorder %s18, 0
    %p133 = por %p131, %p132
    %s135 = sadd.s32 %s134, 1
    %p138 = scmp.eq.s32.totalorder %s12, 1
    %p139 = scmp.ne.s32.totalorder %s134, %s136
    %p140 = scmp.eq.s32.totalorder %s12, 0
    %p141 = por %p139, %p140
    %p142 = scmp.ne.s32.totalorder %s134, %s136
    %p143 = scmp.eq.s32.totalorder %s17, 1
    %p144 = por %p142, %p143
    %p145 = scmp.ne.s32.totalorder %s136, %s137
    %p146 = scmp.eq.s32.totalorder %s17, 0
    %p147 = por %p145, %p146
    %p148 = scmp.ne.s32.totalorder %s136, %s137
    %p149 = scmp.eq.s32.totalorder %s18, 1
    %p150 = por %p148, %p149
    %p152 = scmp.ne.s32.totalorder %s137, %s151
    %p153 = scmp.eq.s32.totalorder %s18, 0
    %p154 = por %p152, %p153
    %s156 = sadd.s32 %s155, 1
    %p159 = scmp.eq.s32.totalorder %s12, 1
    %p160 = scmp.ne.s32.totalorder %s155, %s157
    %p161 = scmp.eq.s32.totalorder %s12, 0
    %p162 = por %p160, %p161
    %p163 = scmp.ne.s32.totalorder %s155, %s157
    %p164 = scmp.eq.s32.totalorder %s17, 1
    %p165 = por %p163, %p164
    %p166 = scmp.ne.s32.totalorder %s157, %s158
    %p167 = scmp.eq.s32.totalorder %s17, 0
    %p168 = por %p166, %p167
    %p169 = scmp.ne.s32.totalorder %s157, %s158
    %p170 = scmp.eq.s32.totalorder %s18, 1
    %p171 = por %p169, %p170
    %p173 = scmp.ne.s32.totalorder %s158, %s172
    %p174 = scmp.eq.s32.totalorder %s18, 0
    %p175 = por %p173, %p174
    %s176 = ssub.s32 %s19, %s31
    %s177 = ssub.s32 %s20, %s27
    %s178 = sor.u32 %s176, %s177
    %p179 = scmp.eq.s32.totalorder %s178, 0
    %s181 = sadd.s32 %s180, 1
    %s182 = scalar_select %p179, %s180, %s181
    %p185 = pneg %p179
    %p186 = scmp.eq.s32.totalorder %s12, 1
    %p187 = por %p185, %p186
    %p188 = scmp.ne.s32.totalorder %s180, %s183
    %p189 = scmp.eq.s32.totalorder %s12, 0
    %p190 = por %p188, %p189
    %p191 = scmp.ne.s32.totalorder %s180, %s183
    %p192 = scmp.eq.s32.totalorder %s17, 1
    %p193 = por %p191, %p192
    %p194 = scmp.ne.s32.totalorder %s183, %s184
    %p195 = scmp.eq.s32.totalorder %s17, 0
    %p196 = por %p194, %p195
    %p197 = scmp.ne.s32.totalorder %s183, %s184
    %p198 = scmp.eq.s32.totalorder %s18, 1
    %p199 = por %p197, %p198
    %p201 = scmp.ne.s32.totalorder %s184, %s200
    %p202 = scmp.eq.s32.totalorder %s18, 0
    %p203 = por %p201, %p202
    %p204 = scmp.le.s32.totalorder 1, %s12
    %p205 = scmp.lt.s32.totalorder %s12, 3
    %p206 = pnand %p204, %p205
    %p207 = pneg %p206
    // Predicated region
    $region9: #{upsample_forward.3} parent=5 // pred_check
      _
    $region10: #{upsample_forward.3} parent=5 // pred_check_branch
      %209 = sbr.rel (%p206) target = $region12
    $region11: #{upsample_forward.3} parent=5 // pred_region
      %s210 = ssub.s32 %s12, 1
      // Predicated region
      $region13: #{upsample_forward.3} parent=11 // pred_check
        %p211 = pneg %p105
      $region14: #{upsample_forward.3} parent=11 // pred_check_branch
        %213 = sbr.rel (%p211) target = $region16
      $region15: #{upsample_forward.3} parent=11 // pred_region
        _
      $region16: #{upsample_forward.3} parent=11 // pred_fallthru
        _
      // Predicated region
      $region17: #{upsample_forward.3} parent=11 // pred_check
        %p214 = pneg %p126
      $region18: #{upsample_forward.3} parent=11 // pred_check_branch
        %216 = sbr.rel (%p214) target = $region20
      $region19: #{upsample_forward.3} parent=11 // pred_region
        _
      $region20: #{upsample_forward.3} parent=11 // pred_fallthru
        _
      // Predicated region
      $region21: #{upsample_forward.3} parent=11 // pred_check
        %p217 = pneg %p147
      $region22: #{upsample_forward.3} parent=11 // pred_check_branch
        %219 = sbr.rel (%p217) target = $region24
      $region23: #{upsample_forward.3} parent=11 // pred_region
        _
      $region24: #{upsample_forward.3} parent=11 // pred_fallthru
        _
      // Predicated region
      $region25: #{upsample_forward.3} parent=11 // pred_check
        %p220 = pneg %p168
      $region26: #{upsample_forward.3} parent=11 // pred_check_branch
        %222 = sbr.rel (%p220) target = $region28
      $region27: #{upsample_forward.3} parent=11 // pred_region
        _
      $region28: #{upsample_forward.3} parent=11 // pred_fallthru
        _
    $region12: #{upsample_forward.3} parent=5 // pred_fallthru
      _
    %p223 = scmp.lt.s32.totalorder %s12, 2
    // Predicated region
    $region29: #{upsample_forward.3} parent=5 // pred_check
      %p224 = pneg %p223
    $region30: #{upsample_forward.3} parent=5 // pred_check_branch
      %226 = sbr.rel (%p224) target = $region32
    $region31: #{upsample_forward.3} parent=5 // pred_region
      // Predicated region
      $region33: #{upsample_forward.3} parent=31 // pred_check
        %p227 = pneg %p46
      $region34: #{upsample_forward.3} parent=31 // pred_check_branch
        %229 = sbr.rel (%p227) target = $region36
      $region35: #{upsample_forward.3} parent=31 // pred_region
        %s230 = smul.u32 8, %s20
        %s231 = ssub.s32 9, %s230
        %p232 = scmp.lt.s32.totalorder %s231, 8
        %s233 = scalar_select %p232, %s231, 8
        %s234 = smul.u32 128, %s233
        %s235 = smul.u32 %s234, 2
        %p236 = scmp.lt.s32.totalorder %s19, 1
        %s237 = scalar_select %p236, %s19, 1
        %p238 = scmp.lt.s32.totalorder %s230, 8
        %s239 = scalar_select %p238, %s230, 8
        %s240 = smul.addr %s239, 2
        %s241 = smul.addr %s237, 18
        %s242 = sadd.s32 %s240, %s241
        %s243 = smul.addr %s242, 8
        %s244 = scalar_lea.vmem %s0, %s243
        %s245 = smul.u32 8, %s20
        %s246 = ssub.s32 9, %s245
        %p247 = scmp.lt.s32.totalorder %s246, 8
        %s248 = scalar_select %p247, %s246, 8
        %s249 = smul.u32 128, %s248
        %s250 = smul.u32 %s249, 2
      $region36: #{upsample_forward.3} parent=31 // pred_fallthru
        _
      // Predicated region
      $region37: #{upsample_forward.3} parent=31 // pred_check
        %p251 = pneg %p78
      $region38: #{upsample_forward.3} parent=31 // pred_check_branch
        %253 = sbr.rel (%p251) target = $region40
      $region39: #{upsample_forward.3} parent=31 // pred_region
        %s254 = smul.u32 %s20, 8
        %s255 = sadd.s32 %s254, 8
        %p256 = scmp.lt.s32.totalorder %s19, 1
        %s257 = scalar_select %p256, %s19, 1
        %p258 = scmp.lt.s32.totalorder %s255, 8
        %s259 = scalar_select %p258, %s255, 8
        %s260 = smul.addr %s259, 2
        %s261 = smul.addr %s257, 18
        %s262 = sadd.s32 %s260, %s261
        %s263 = smul.addr %s262, 8
        %s264 = scalar_lea.vmem %s1, %s263
        %s265 = smul.u32 %s20, 8
        %s266 = sadd.s32 %s265, 8
      $region40: #{upsample_forward.3} parent=31 // pred_fallthru
        _
    $region32: #{upsample_forward.3} parent=5 // pred_fallthru
      _
    %p267 = scmp.le.s32.totalorder 1, %s12
    %p268 = scmp.lt.s32.totalorder %s12, 3
    %p269 = pnand %p267, %p268
    %p270 = pneg %p269
    // Predicated region
    $region41: #{upsample_forward.3} parent=5 // pred_check
      _
    $region42: #{upsample_forward.3} parent=5 // pred_check_branch
      %272 = sbr.rel (%p269) target = $region44
    $region43: #{upsample_forward.3} parent=5 // pred_region
      %s273 = ssub.s32 %s12, 1
      %s274 = smul.u32 8, %s22
      %s275 = ssub.s32 9, %s274
      %p276 = scmp.lt.s32.totalorder %s275, 8
      %s277 = scalar_select %p276, %s275, 8
      %s278 = smul.u32 128, %s277
      %s279 = smul.u32 %s278, 2
      %p280 = scmp.lt.s32.totalorder %s21, 1
      %s281 = scalar_select %p280, %s21, 1
      %p282 = scmp.lt.s32.totalorder %s274, 8
      %s283 = scalar_select %p282, %s274, 8
      %s284 = smul.addr %s283, 2
      %s285 = smul.addr %s281, 18
      %s286 = sadd.s32 %s284, %s285
      %s287 = smul.addr %s286, 8
      %s288 = scalar_lea.vmem %s0, %s287
      %p289 = pneg %p52
      %p290 = pneg %p49
      %s291 = smul.u32 %s22, 8
      %s292 = sadd.s32 %s291, 8
      %p293 = scmp.lt.s32.totalorder %s21, 1
      %s294 = scalar_select %p293, %s21, 1
      %p295 = scmp.lt.s32.totalorder %s292, 8
      %s296 = scalar_select %p295, %s292, 8
      %s297 = smul.addr %s296, 2
      %s298 = smul.addr %s294, 18
      %s299 = sadd.s32 %s297, %s298
      %s300 = smul.addr %s299, 8
      %s301 = scalar_lea.vmem %s1, %s300
      %p302 = pneg %p84
      %p303 = pneg %p81
      %p304 = pneg %p105
      %p305 = pneg %p102
      %p306 = pneg %p126
      %p307 = pneg %p123
      %p308 = pneg %p147
      %p309 = pneg %p144
      %p310 = pneg %p168
      %p311 = pneg %p165
      %p312 = pneg %p196
      %p313 = pneg %p193
      %s314 = smul.u32 8, %s22
      %p315 = scmp.lt.s32.totalorder %s21, 1
      %s316 = scalar_select %p315, %s21, 1
      %p317 = scmp.lt.s32.totalorder %s314, 7
      %s318 = scalar_select %p317, %s314, 7
      %s319 = smul.addr %s316, 8
      %s320 = sadd.s32 %s318, %s319
      %s321 = smul.addr %s320, 8
      %s322 = scalar_lea.vmem %s6, %s321
      %s323 = smul.u32 8, %s22
      %s324 = ssub.s32 9, %s323
      %p325 = scmp.lt.s32.totalorder %s324, 8
      %s326 = scalar_select %p325, %s324, 8
      %s327 = smul.u32 128, %s326
      %s328 = smul.u32 %s327, 2
      %p329 = scmp.lt.s32.totalorder %s21, 1
      %s330 = scalar_select %p329, %s21, 1
      %p331 = scmp.lt.s32.totalorder %s323, 8
      %s332 = scalar_select %p331, %s323, 8
      %s333 = smul.addr %s332, 2
      %s334 = smul.addr %s330, 18
      %s335 = sadd.s32 %s333, %s334
      %s336 = smul.addr %s335, 8
      %s337 = scalar_lea.vmem %s0, %s336
      %s338 = smul.u32 8, %s22
      %s339 = ssub.s32 9, %s338
      %p340 = scmp.lt.s32.totalorder %s339, 8
      %s341 = scalar_select %p340, %s339, 8
      %s342 = smul.u32 128, %s341
      %s343 = smul.u32 %s342, 2
      %s344 = smul.u32 %s22, 8
      %s345 = sadd.s32 %s344, 8
      %p346 = scmp.lt.s32.totalorder %s21, 1
      %s347 = scalar_select %p346, %s21, 1
      %p348 = scmp.lt.s32.totalorder %s345, 8
      %s349 = scalar_select %p348, %s345, 8
      %s350 = smul.addr %s349, 2
      %s351 = smul.addr %s347, 18
      %s352 = sadd.s32 %s350, %s351
      %s353 = smul.addr %s352, 8
      %s354 = scalar_lea.vmem %s1, %s353
      %s355 = smul.u32 %s22, 8
      %s356 = sadd.s32 %s355, 8
      %s357 = smul.u32 8, %s22
      %p358 = scmp.lt.s32.totalorder %s21, 1
      %s359 = scalar_select %p358, %s21, 1
      %p360 = scmp.lt.s32.totalorder %s357, 7
      %s361 = scalar_select %p360, %s357, 7
      %s362 = smul.addr %s359, 8
      %s363 = sadd.s32 %s361, %s362
      %s364 = smul.addr %s363, 8
      %s365 = scalar_lea.vmem %s6, %s364
      %s366 = smul.u32 8, %s22
      %v368 = vld [vmem:[%s337] sm:$0xff]
      %v369 = vld [vmem:[%s337 + $0x8] sm:$0x1]
      %v370 = vld [vmem:[%s337 + $0x10] sm:$0xff]
      %v371 = vld [vmem:[%s337 + $0x18] sm:$0x1]
      %v372 = vld [vmem:[%s337 + $0x20] sm:$0xff]
      %v373 = vld [vmem:[%s337 + $0x28] sm:$0x1]
      %v374 = vld [vmem:[%s337 + $0x30] sm:$0xff]
      %v375 = vld [vmem:[%s337 + $0x38] sm:$0x1]
      %v376 = vld [vmem:[%s337 + $0x40] sm:$0xff]
      %v377 = vld [vmem:[%s337 + $0x48] sm:$0x1]
      %v378 = vld [vmem:[%s337 + $0x50] sm:$0xff]
      %v379 = vld [vmem:[%s337 + $0x58] sm:$0x1]
      %v380 = vld [vmem:[%s337 + $0x60] sm:$0xff]
      %v381 = vld [vmem:[%s337 + $0x68] sm:$0x1]
      %v382 = vld [vmem:[%s337 + $0x70] sm:$0xff]
      %v383 = vld [vmem:[%s337 + $0x78] sm:$0x1]
      %v384 = vld [vmem:[%s354] sm:$0xff]
      %v385 = vld [vmem:[%s354 + $0x8] sm:$0x1]
      %v386 = vld [vmem:[%s2] sm:$0x1]
      %v388 = vlaneseq
      %v389 = vshrl.u32 %v388, 7
      %v390 = vsub.s32 0, %v389
      %v391 = vrot.slane %v386, %v390
      %v393 = vmul.f32 %v368, %v391
      %v394 = vmul.f32 %v369, %v391
      %v395 = vmul.f32 %v370, %v391
      %v396 = vmul.f32 %v371, %v391
      %v397 = vmul.f32 %v372, %v391
      %v398 = vmul.f32 %v373, %v391
      %v399 = vmul.f32 %v374, %v391
      %v400 = vmul.f32 %v375, %v391
      %v401 = vmul.f32 %v376, %v391
      %v402 = vmul.f32 %v377, %v391
      %v403 = vmul.f32 %v378, %v391
      %v404 = vmul.f32 %v379, %v391
      %v405 = vmul.f32 %v380, %v391
      %v406 = vmul.f32 %v381, %v391
      %v407 = vmul.f32 %v382, %v391
      %v408 = vmul.f32 %v383, %v391
      %v409 = vmul.f32 %v384, %v391
      %v410 = vmul.f32 %v385, %v391
      %v411 = vld [vmem:[%s3] sm:$0x1]
      %v413 = vlaneseq
      %v414 = vshrl.u32 %v413, 7
      %v415 = vsub.s32 0, %v414
      %v416 = vrot.slane %v411, %v415
      %v418 = vadd.f32 %v393, %v416
      %v419 = vadd.f32 %v394, %v416
      %v420 = vadd.f32 %v395, %v416
      %v421 = vadd.f32 %v396, %v416
      %v422 = vadd.f32 %v397, %v416
      %v423 = vadd.f32 %v398, %v416
      %v424 = vadd.f32 %v399, %v416
      %v425 = vadd.f32 %v400, %v416
      %v426 = vadd.f32 %v401, %v416
      %v427 = vadd.f32 %v402, %v416
      %v428 = vadd.f32 %v403, %v416
      %v429 = vadd.f32 %v404, %v416
      %v430 = vadd.f32 %v405, %v416
      %v431 = vadd.f32 %v406, %v416
      %v432 = vadd.f32 %v407, %v416
      %v433 = vadd.f32 %v408, %v416
      %v434 = vadd.f32 %v409, %v416
      %v435 = vadd.f32 %v410, %v416
      %v436 = vmax.f32 %v418, 0.0
      %v437 = vmax.f32 %v419, 0.0
      %v438 = vmax.f32 %v420, 0.0
      %v439 = vmax.f32 %v421, 0.0
      %v440 = vmax.f32 %v422, 0.0
      %v441 = vmax.f32 %v423, 0.0
      %v442 = vmax.f32 %v424, 0.0
      %v443 = vmax.f32 %v425, 0.0
      %v444 = vmax.f32 %v426, 0.0
      %v445 = vmax.f32 %v427, 0.0
      %v446 = vmax.f32 %v428, 0.0
      %v447 = vmax.f32 %v429, 0.0
      %v448 = vmax.f32 %v430, 0.0
      %v449 = vmax.f32 %v431, 0.0
      %v450 = vmax.f32 %v432, 0.0
      %v451 = vmax.f32 %v433, 0.0
      %v452 = vmax.f32 %v434, 0.0
      %v453 = vmax.f32 %v435, 0.0
      %s454 = smul.u32 %s22, 8
      %v455 = vstv %s454
      %v456 = vadd.s32 %v455, 1
      %v457 = vadd.s32 %v455, 2
      %v458 = vadd.s32 %v455, 3
      %v459 = vadd.s32 %v455, 4
      %v460 = vadd.s32 %v455, 5
      %v461 = vadd.s32 %v455, 6
      %v462 = vadd.s32 %v455, 7
      %v463 = vadd.s32 %v455, 8
      %v464 = vlaneseq
      %v465 = vshrl.u32 %v464, 7
      %v466 = vadd.s32 %v465, 8
      %v467 = vlaneseq
      %v468 = vand.u32 %v467, 127
      %vm469 = vcmp.ge.s32.totalorder %v468, 8
      %v470 = vsel %vm469, 1, 0
      %vm471 = vcmp.ge.s32.totalorder %v468, 4
      %vm472 = vcmp.lt.s32.totalorder %v468, 8
      %vm473 = vmand %vm471, %vm472
      %vm474 = vcmp.ge.s32.totalorder %v468, 12
      %vm475 = vmor %vm473, %vm474
      %v476 = vsel %vm475, 1, 0
      %v477 = vmul.u32 %v455, 2
      %v478 = vmul.u32 %v456, 2
      %v479 = vmul.u32 %v457, 2
      %v480 = vmul.u32 %v458, 2
      %v481 = vmul.u32 %v459, 2
      %v482 = vmul.u32 %v460, 2
      %v483 = vmul.u32 %v461, 2
      %v484 = vmul.u32 %v462, 2
      %v485 = vmul.u32 %v463, 2
      %v486 = vadd.s32 %v477, %v470
      %v487 = vadd.s32 %v478, %v470
      %v488 = vadd.s32 %v479, %v470
      %v489 = vadd.s32 %v480, %v470
      %v490 = vadd.s32 %v481, %v470
      %v491 = vadd.s32 %v482, %v470
      %v492 = vadd.s32 %v483, %v470
      %v493 = vadd.s32 %v484, %v470
      %v494 = vadd.s32 %v485, %v470
      %v495 = vmul.u32 %v465, 2
      %v496 = vmul.u32 %v466, 2
      %v497 = vadd.s32 %v495, %v476
      %v498 = vadd.s32 %v496, %v476
      %vm499 = vcmp.ge.s32.totalorder %v486, 1
      %vm500 = vcmp.ge.s32.totalorder %v487, 1
      %vm501 = vcmp.ge.s32.totalorder %v488, 1
      %vm502 = vcmp.ge.s32.totalorder %v489, 1
      %vm503 = vcmp.ge.s32.totalorder %v490, 1
      %vm504 = vcmp.ge.s32.totalorder %v491, 1
      %vm505 = vcmp.ge.s32.totalorder %v492, 1
      %vm506 = vcmp.ge.s32.totalorder %v493, 1
      %vm507 = vcmp.ge.s32.totalorder %v494, 1
      %vm508 = vcmp.le.s32.totalorder %v486, 16
      %vm509 = vcmp.le.s32.totalorder %v487, 16
      %vm510 = vcmp.le.s32.totalorder %v488, 16
      %vm511 = vcmp.le.s32.totalorder %v489, 16
      %vm512 = vcmp.le.s32.totalorder %v490, 16
      %vm513 = vcmp.le.s32.totalorder %v491, 16
      %vm514 = vcmp.le.s32.totalorder %v492, 16
      %vm515 = vcmp.le.s32.totalorder %v493, 16
      %vm516 = vcmp.le.s32.totalorder %v494, 16
      %vm517 = vmand %vm499, %vm508
      %vm518 = vmand %vm500, %vm509
      %vm519 = vmand %vm501, %vm510
      %vm520 = vmand %vm502, %vm511
      %vm521 = vmand %vm503, %vm512
      %vm522 = vmand %vm504, %vm513
      %vm523 = vmand %vm505, %vm514
      %vm524 = vmand %vm506, %vm515
      %vm525 = vmand %vm507, %vm516
      %vm526 = vcmp.ge.s32.totalorder %v497, 1
      %vm527 = vcmp.ge.s32.totalorder %v498, 1
      %vm528 = vmand %vm517, %vm526
      %vm529 = vmand %vm517, %vm527
      %vm530 = vmand %vm518, %vm526
      %vm531 = vmand %vm518, %vm527
      %vm532 = vmand %vm519, %vm526
      %vm533 = vmand %vm519, %vm527
      %vm534 = vmand %vm520, %vm526
      %vm535 = vmand %vm520, %vm527
      %vm536 = vmand %vm521, %vm526
      %vm537 = vmand %vm521, %vm527
      %vm538 = vmand %vm522, %vm526
      %vm539 = vmand %vm522, %vm527
      %vm540 = vmand %vm523, %vm526
      %vm541 = vmand %vm523, %vm527
      %vm542 = vmand %vm524, %vm526
      %vm543 = vmand %vm524, %vm527
      %vm544 = vmand %vm525, %vm526
      %vm545 = vmand %vm525, %vm527
      %vm546 = vcmp.le.s32.totalorder %v497, 16
      %vm547 = vcmp.le.s32.totalorder %v498, 16
      %vm548 = vmand %vm528, %vm546
      %vm549 = vmand %vm529, %vm547
      %vm550 = vmand %vm530, %vm546
      %vm551 = vmand %vm531, %vm547
      %vm552 = vmand %vm532, %vm546
      %vm553 = vmand %vm533, %vm547
      %vm554 = vmand %vm534, %vm546
      %vm555 = vmand %vm535, %vm547
      %vm556 = vmand %vm536, %vm546
      %vm557 = vmand %vm537, %vm547
      %vm558 = vmand %vm538, %vm546
      %vm559 = vmand %vm539, %vm547
      %vm560 = vmand %vm540, %vm546
      %vm561 = vmand %vm541, %vm547
      %vm562 = vmand %vm542, %vm546
      %vm563 = vmand %vm543, %vm547
      %vm564 = vmand %vm544, %vm546
      %vm565 = vmand %vm545, %vm547
      %v566 = vsel %vm548, %v436, 0.0
      %v567 = vsel %vm549, %v437, 0.0
      %v568 = vsel %vm550, %v438, 0.0
      %v569 = vsel %vm551, %v439, 0.0
      %v570 = vsel %vm552, %v440, 0.0
      %v571 = vsel %vm553, %v441, 0.0
      %v572 = vsel %vm554, %v442, 0.0
      %v573 = vsel %vm555, %v443, 0.0
      %v574 = vsel %vm556, %v444, 0.0
      %v575 = vsel %vm557, %v445, 0.0
      %v576 = vsel %vm558, %v446, 0.0
      %v577 = vsel %vm559, %v447, 0.0
      %v578 = vsel %vm560, %v448, 0.0
      %v579 = vsel %vm561, %v449, 0.0
      %v580 = vsel %vm562, %v450, 0.0
      %v581 = vsel %vm563, %v451, 0.0
      %v582 = vsel %vm564, %v452, 0.0
      %v583 = vsel %vm565, %v453, 0.0
      %v584 = vpack.c.bf16 %v567, %v566
      %v585 = vpack.c.bf16 %v569, %v568
      %v586 = vpack.c.bf16 %v571, %v570
      %v587 = vpack.c.bf16 %v573, %v572
      %v588 = vpack.c.bf16 %v575, %v574
      %v589 = vpack.c.bf16 %v577, %v576
      %v590 = vpack.c.bf16 %v579, %v578
      %v591 = vpack.c.bf16 %v581, %v580
      %v592 = vpack.c.bf16 %v583, %v582
      %v593 = vld [vmem:[%s4] sm:$0xf]
      %v594 = vld [vmem:[%s4 + $0x4] sm:$0xf]
      %v603 = vunpack.c.l.b16 %v584
      %v604 = vunpack.c.h.b16 %v584
      %v605 = vunpack.c.l.b16 %v585
      %v606 = vunpack.c.h.b16 %v585
      %v607 = vunpack.c.l.b16 %v586
      %v608 = vunpack.c.h.b16 %v586
      %v609 = vunpack.c.l.b16 %v587
      %v610 = vunpack.c.h.b16 %v587
      %v611 = vunpack.c.l.b16 %v588
      %v612 = vunpack.c.h.b16 %v588
      %v613 = vunpack.c.l.b16 %v589
      %v614 = vunpack.c.h.b16 %v589
      %v615 = vunpack.c.l.b16 %v590
      %v616 = vunpack.c.h.b16 %v590
      %v617 = vunpack.c.l.b16 %v591
      %v618 = vunpack.c.h.b16 %v591
      %v619 = vpack.c.b16 %v603, %v603
      %v620 = vpack.c.b16 %v604, %v604
      %v621 = vpack.c.b16 %v605, %v605
      %v622 = vpack.c.b16 %v606, %v606
      %v623 = vpack.c.b16 %v607, %v607
      %v624 = vpack.c.b16 %v608, %v608
      %v625 = vpack.c.b16 %v609, %v609
      %v626 = vpack.c.b16 %v610, %v610
      %v627 = vpack.c.b16 %v611, %v611
      %v628 = vpack.c.b16 %v612, %v612
      %v629 = vpack.c.b16 %v613, %v613
      %v630 = vpack.c.b16 %v614, %v614
      %v631 = vpack.c.b16 %v615, %v615
      %v632 = vpack.c.b16 %v616, %v616
      %v633 = vpack.c.b16 %v617, %v617
      %v634 = vpack.c.b16 %v618, %v618
      %vm635 = vsmask.f32 3328
      %vm636 = vsmask.f32 7440
      %vm637 = vmor %vm635, %vm636
      %v639 = vshrl.u32 %v619, 16
      %v641 = vrot.slane %v639, 4
      %v642 = vshll.u32 %v619, 16
      %v644 = vrot.slane %v642, 5
      %v645 = vor.u32 %v641, %v644
      %v646 = vrot.slane %v645, 4
      %v648 = vshll.u32 %v620, 16
      %v650 = vrot.slane %v648, 5
      %v651 = vsel %vm637, %v646, %v650
      %v653 = vshrl.u32 %v621, 16
      %v655 = vrot.slane %v653, 4
      %v656 = vshll.u32 %v621, 16
      %v658 = vrot.slane %v656, 5
      %v659 = vor.u32 %v655, %v658
      %v660 = vrot.slane %v659, 4
      %v662 = vshll.u32 %v622, 16
      %v664 = vrot.slane %v662, 5
      %v665 = vsel %vm637, %v660, %v664
      %v667 = vshrl.u32 %v623, 16
      %v669 = vrot.slane %v667, 4
      %v670 = vshll.u32 %v623, 16
      %v672 = vrot.slane %v670, 5
      %v673 = vor.u32 %v669, %v672
      %v674 = vrot.slane %v673, 4
      %v676 = vshll.u32 %v624, 16
      %v678 = vrot.slane %v676, 5
      %v679 = vsel %vm637, %v674, %v678
      %v681 = vshrl.u32 %v625, 16
      %v683 = vrot.slane %v681, 4
      %v684 = vshll.u32 %v625, 16
      %v686 = vrot.slane %v684, 5
      %v687 = vor.u32 %v683, %v686
      %v688 = vrot.slane %v687, 4
      %v690 = vshll.u32 %v626, 16
      %v692 = vrot.slane %v690, 5
      %v693 = vsel %vm637, %v688, %v692
      %v695 = vshrl.u32 %v627, 16
      %v697 = vrot.slane %v695, 4
      %v698 = vshll.u32 %v627, 16
      %v700 = vrot.slane %v698, 5
      %v701 = vor.u32 %v697, %v700
      %v702 = vrot.slane %v701, 4
      %v704 = vshll.u32 %v628, 16
      %v706 = vrot.slane %v704, 5
      %v707 = vsel %vm637, %v702, %v706
      %v709 = vshrl.u32 %v629, 16
      %v711 = vrot.slane %v709, 4
      %v712 = vshll.u32 %v629, 16
      %v714 = vrot.slane %v712, 5
      %v715 = vor.u32 %v711, %v714
      %v716 = vrot.slane %v715, 4
      %v718 = vshll.u32 %v630, 16
      %v720 = vrot.slane %v718, 5
      %v721 = vsel %vm637, %v716, %v720
      %v723 = vshrl.u32 %v631, 16
      %v725 = vrot.slane %v723, 4
      %v726 = vshll.u32 %v631, 16
      %v728 = vrot.slane %v726, 5
      %v729 = vor.u32 %v725, %v728
      %v730 = vrot.slane %v729, 4
      %v732 = vshll.u32 %v632, 16
      %v734 = vrot.slane %v732, 5
      %v735 = vsel %vm637, %v730, %v734
      %v737 = vshrl.u32 %v633, 16
      %v739 = vrot.slane %v737, 4
      %v740 = vshll.u32 %v633, 16
      %v742 = vrot.slane %v740, 5
      %v743 = vor.u32 %v739, %v742
      %v744 = vrot.slane %v743, 4
      %v746 = vshll.u32 %v634, 16
      %v748 = vrot.slane %v746, 5
      %v749 = vsel %vm637, %v744, %v748
      %s750 = scalar_lea.vmem %s4, 8
      %v751 = vld [vmem:[%s750] sm:$0xf]
      %v752 = vld [vmem:[%s750 + $0x4] sm:$0xf]
      %v753 = vunpack.c.l.b16 %v651
      %v754 = vunpack.c.l.b16 %v665
      %v755 = vunpack.c.l.b16 %v679
      %v756 = vunpack.c.l.b16 %v693
      %v757 = vunpack.c.l.b16 %v707
      %v758 = vunpack.c.l.b16 %v721
      %v759 = vunpack.c.l.b16 %v735
      %v760 = vunpack.c.l.b16 %v749
      %v761 = vpack.c.b16 %v754, %v753
      %v762 = vpack.c.b16 %v756, %v755
      %v763 = vpack.c.b16 %v758, %v757
      %v764 = vpack.c.b16 %v760, %v759
      %v767 = vunpack.c.l.b16 %v751
      %v768 = vunpack.c.l.b16 %v752
      %v769 = vpack.c.b16 %v768, %v767
      %vm771 = vcmask 130048
      %v773 = vsel %vm771, %v761, 0
      %v776 = vsel %vm771, %v762, 0
      %v779 = vsel %vm771, %v763, 0
      %v782 = vsel %vm771, %v764, 0
      %784 = vmatprep.subr.bf16.mxu0 0
      %785 = vmatpush1.bf16.msra.mxu0 0
      %786 = vmatprep.subr.bf16.mxu0 0
      %787 = vmatpush1.bf16.msra.mxu0 0
      %788 = vmatprep.subr.bf16.mxu0 0
      %789 = vmatpush1.bf16.msra.mxu0 0
      %790 = vmatprep.subr.bf16.mxu0 0
      %791 = vmatpush1.bf16.msra.mxu0 0
      %792 = vmatprep.subr.bf16.mxu0 0
      %793 = vmatpush1.bf16.msra.mxu0 0
      %794 = vmatprep.subr.bf16.mxu0 0
      %795 = vmatpush1.bf16.msra.mxu0 0
      %796 = vmatprep.subr.bf16.mxu0 0
      %797 = vmatpush1.bf16.msra.mxu0 0
      %798 = vmatprep.subr.bf16.mxu0 0
      %799 = vmatpush1.bf16.msra.mxu0 %v769
      %800 = vmatprep.subr.bf16.mxu0 0
      %801 = vmatpush2.bf16.msra.mxu0 0
      %802 = vmatprep.subr.bf16.mxu0 0
      %803 = vmatpush2.bf16.msra.mxu0 0
      %804 = vmatprep.subr.bf16.mxu0 0
      %805 = vmatpush2.bf16.msra.mxu0 0
      %806 = vmatprep.subr.bf16.mxu0 0
      %807 = vmatpush2.bf16.msra.mxu0 0
      %808 = vmatprep.subr.bf16.mxu0 0
      %809 = vmatpush2.bf16.msra.mxu0 0
      %810 = vmatprep.subr.bf16.mxu0 0
      %811 = vmatpush2.bf16.msra.mxu0 0
      %812 = vmatprep.subr.bf16.mxu0 0
      %813 = vmatpush2.bf16.msra.mxu0 0
      %814 = vmatprep.subr.bf16.mxu0 0
      %815 = vmatpush2.bf16.msra.mxu0 0
      %816 = vmatprep.mubr.bf16.mxu0 0
      %817 = vmatmul.mubr.bf16.gmra.mxu0 %v773
      %v818 = vpop.f32.mrf.mxu0
      %v819 = vadd.f32 0.0, %v818
      %v820 = vpop.f32.mrf.mxu0
      %v821 = vpop.f32.mrf.mxu0
      %v822 = vadd.f32 0.0, %v821
      %v823 = vpop.f32.mrf.mxu0
      %824 = vmatprep.mubr.bf16.mxu0 0
      %825 = vmatmul.mubr.bf16.gmra.mxu0 %v776
      %v826 = vpop.f32.mrf.mxu0
      %v827 = vadd.f32 0.0, %v826
      %v828 = vpop.f32.mrf.mxu0
      %v829 = vpop.f32.mrf.mxu0
      %v830 = vadd.f32 0.0, %v829
      %v831 = vpop.f32.mrf.mxu0
      %832 = vmatprep.mubr.bf16.mxu0 0
      %833 = vmatmul.mubr.bf16.gmra.mxu0 %v779
      %v834 = vpop.f32.mrf.mxu0
      %v835 = vadd.f32 0.0, %v834
      %v836 = vpop.f32.mrf.mxu0
      %v837 = vpop.f32.mrf.mxu0
      %v838 = vadd.f32 0.0, %v837
      %v839 = vpop.f32.mrf.mxu0
      %840 = vmatprep.mubr.bf16.mxu0 0
      %841 = vmatmul.mubr.bf16.gmra.mxu0 %v782
      %v842 = vpop.f32.mrf.mxu0
      %v843 = vadd.f32 0.0, %v842
      %v844 = vpop.f32.mrf.mxu0
      %v845 = vpop.f32.mrf.mxu0
      %v846 = vadd.f32 0.0, %v845
      %v847 = vpop.f32.mrf.mxu0
      %848 = vdwg.mxu0
      %v849 = vpack.c.b16 %v605, %v603
      %v850 = vpack.c.b16 %v609, %v607
      %v851 = vpack.c.b16 %v613, %v611
      %v852 = vpack.c.b16 %v617, %v615
      %v855 = vunpack.c.l.b16 %v593
      %v856 = vunpack.c.l.b16 %v594
      %v857 = vpack.c.b16 %v856, %v855
      %v860 = vsel %vm771, %v849, 0
      %v863 = vsel %vm771, %v850, 0
      %v866 = vsel %vm771, %v851, 0
      %v869 = vsel %vm771, %v852, 0
      %871 = vmatprep.subr.bf16.mxu0 0
      %872 = vmatpush1.bf16.msra.mxu0 0
      %873 = vmatprep.subr.bf16.mxu0 0
      %874 = vmatpush1.bf16.msra.mxu0 0
      %875 = vmatprep.subr.bf16.mxu0 0
      %876 = vmatpush1.bf16.msra.mxu0 0
      %877 = vmatprep.subr.bf16.mxu0 0
      %878 = vmatpush1.bf16.msra.mxu0 0
      %879 = vmatprep.subr.bf16.mxu0 0
      %880 = vmatpush1.bf16.msra.mxu0 0
      %881 = vmatprep.subr.bf16.mxu0 0
      %882 = vmatpush1.bf16.msra.mxu0 0
      %883 = vmatprep.subr.bf16.mxu0 0
      %884 = vmatpush1.bf16.msra.mxu0 0
      %885 = vmatprep.subr.bf16.mxu0 0
      %886 = vmatpush1.bf16.msra.mxu0 %v857
      %887 = vmatprep.subr.bf16.mxu0 0
      %888 = vmatpush2.bf16.msra.mxu0 0
      %889 = vmatprep.subr.bf16.mxu0 0
      %890 = vmatpush2.bf16.msra.mxu0 0
      %891 = vmatprep.subr.bf16.mxu0 0
      %892 = vmatpush2.bf16.msra.mxu0 0
      %893 = vmatprep.subr.bf16.mxu0 0
      %894 = vmatpush2.bf16.msra.mxu0 0
      %895 = vmatprep.subr.bf16.mxu0 0
      %896 = vmatpush2.bf16.msra.mxu0 0
      %897 = vmatprep.subr.bf16.mxu0 0
      %898 = vmatpush2.bf16.msra.mxu0 0
      %899 = vmatprep.subr.bf16.mxu0 0
      %900 = vmatpush2.bf16.msra.mxu0 0
      %901 = vmatprep.subr.bf16.mxu0 0
      %902 = vmatpush2.bf16.msra.mxu0 0
      %903 = vmatprep.mubr.bf16.mxu0 0
      %904 = vmatmul.mubr.bf16.gmra.mxu0 %v860
      %v905 = vpop.f32.mrf.mxu0
      %v906 = vadd.f32 %v819, %v905
      %v907 = vpop.f32.mrf.mxu0
      %v908 = vpop.f32.mrf.mxu0
      %v909 = vadd.f32 %v822, %v908
      %v910 = vpop.f32.mrf.mxu0
      %911 = vmatprep.mubr.bf16.mxu0 0
      %912 = vmatmul.mubr.bf16.gmra.mxu0 %v863
      %v913 = vpop.f32.mrf.mxu0
      %v914 = vadd.f32 %v827, %v913
      %v915 = vpop.f32.mrf.mxu0
      %v916 = vpop.f32.mrf.mxu0
      %v917 = vadd.f32 %v830, %v916
      %v918 = vpop.f32.mrf.mxu0
      %919 = vmatprep.mubr.bf16.mxu0 0
      %920 = vmatmul.mubr.bf16.gmra.mxu0 %v866
      %v921 = vpop.f32.mrf.mxu0
      %v922 = vadd.f32 %v835, %v921
      %v923 = vpop.f32.mrf.mxu0
      %v924 = vpop.f32.mrf.mxu0
      %v925 = vadd.f32 %v838, %v924
      %v926 = vpop.f32.mrf.mxu0
      %927 = vmatprep.mubr.bf16.mxu0 0
      %928 = vmatmul.mubr.bf16.gmra.mxu0 %v869
      %v929 = vpop.f32.mrf.mxu0
      %v930 = vadd.f32 %v843, %v929
      %v931 = vpop.f32.mrf.mxu0
      %v932 = vpop.f32.mrf.mxu0
      %v933 = vadd.f32 %v846, %v932
      %v934 = vpop.f32.mrf.mxu0
      %935 = vdwg.mxu0
      %s936 = scalar_lea.vmem %s4, 16
      %v937 = vld [vmem:[%s936] sm:$0xf]
      %v938 = vld [vmem:[%s936 + $0x4] sm:$0xf]
      %v940 = vunpack.c.l.b16 %v592
      %v941 = vpack.c.b16 %v607, %v605
      %v942 = vpack.c.b16 %v611, %v609
      %v943 = vpack.c.b16 %v615, %v613
      %v944 = vpack.c.b16 %v940, %v617
      %v947 = vunpack.c.l.b16 %v937
      %v948 = vunpack.c.l.b16 %v938
      %v949 = vpack.c.b16 %v948, %v947
      %v952 = vsel %vm771, %v941, 0
      %v955 = vsel %vm771, %v942, 0
      %v958 = vsel %vm771, %v943, 0
      %v961 = vsel %vm771, %v944, 0
      %963 = vmatprep.subr.bf16.mxu0 0
      %964 = vmatpush1.bf16.msra.mxu0 0
      %965 = vmatprep.subr.bf16.mxu0 0
      %966 = vmatpush1.bf16.msra.mxu0 0
      %967 = vmatprep.subr.bf16.mxu0 0
      %968 = vmatpush1.bf16.msra.mxu0 0
      %969 = vmatprep.subr.bf16.mxu0 0
      %970 = vmatpush1.bf16.msra.mxu0 0
      %971 = vmatprep.subr.bf16.mxu0 0
      %972 = vmatpush1.bf16.msra.mxu0 0
      %973 = vmatprep.subr.bf16.mxu0 0
      %974 = vmatpush1.bf16.msra.mxu0 0
      %975 = vmatprep.subr.bf16.mxu0 0
      %976 = vmatpush1.bf16.msra.mxu0 0
      %977 = vmatprep.subr.bf16.mxu0 0
      %978 = vmatpush1.bf16.msra.mxu0 %v949
      %979 = vmatprep.subr.bf16.mxu0 0
      %980 = vmatpush2.bf16.msra.mxu0 0
      %981 = vmatprep.subr.bf16.mxu0 0
      %982 = vmatpush2.bf16.msra.mxu0 0
      %983 = vmatprep.subr.bf16.mxu0 0
      %984 = vmatpush2.bf16.msra.mxu0 0
      %985 = vmatprep.subr.bf16.mxu0 0
      %986 = vmatpush2.bf16.msra.mxu0 0
      %987 = vmatprep.subr.bf16.mxu0 0
      %988 = vmatpush2.bf16.msra.mxu0 0
      %989 = vmatprep.subr.bf16.mxu0 0
      %990 = vmatpush2.bf16.msra.mxu0 0
      %991 = vmatprep.subr.bf16.mxu0 0
      %992 = vmatpush2.bf16.msra.mxu0 0
      %993 = vmatprep.subr.bf16.mxu0 0
      %994 = vmatpush2.bf16.msra.mxu0 0
      %995 = vmatprep.mubr.bf16.mxu0 0
      %996 = vmatmul.mubr.bf16.gmra.mxu0 %v952
      %v997 = vpop.f32.mrf.mxu0
      %v998 = vadd.f32 0.0, %v997
      %v999 = vpop.f32.mrf.mxu0
      %v1000 = vpop.f32.mrf.mxu0
      %v1001 = vadd.f32 0.0, %v1000
      %v1002 = vpop.f32.mrf.mxu0
      %1003 = vmatprep.mubr.bf16.mxu0 0
      %1004 = vmatmul.mubr.bf16.gmra.mxu0 %v955
      %v1005 = vpop.f32.mrf.mxu0
      %v1006 = vadd.f32 0.0, %v1005
      %v1007 = vpop.f32.mrf.mxu0
      %v1008 = vpop.f32.mrf.mxu0
      %v1009 = vadd.f32 0.0, %v1008
      %v1010 = vpop.f32.mrf.mxu0
      %1011 = vmatprep.mubr.bf16.mxu0 0
      %1012 = vmatmul.mubr.bf16.gmra.mxu0 %v958
      %v1013 = vpop.f32.mrf.mxu0
      %v1014 = vadd.f32 0.0, %v1013
      %v1015 = vpop.f32.mrf.mxu0
      %v1016 = vpop.f32.mrf.mxu0
      %v1017 = vadd.f32 0.0, %v1016
      %v1018 = vpop.f32.mrf.mxu0
      %1019 = vmatprep.mubr.bf16.mxu0 0
      %1020 = vmatmul.mubr.bf16.gmra.mxu0 %v961
      %v1021 = vpop.f32.mrf.mxu0
      %v1022 = vadd.f32 0.0, %v1021
      %v1023 = vpop.f32.mrf.mxu0
      %v1024 = vpop.f32.mrf.mxu0
      %v1025 = vadd.f32 0.0, %v1024
      %v1026 = vpop.f32.mrf.mxu0
      %1027 = vdwg.mxu0
      %v1028 = vadd.f32 %v906, %v998
      %v1029 = vadd.f32 %v909, %v1001
      %v1030 = vadd.f32 %v914, %v1006
      %v1031 = vadd.f32 %v917, %v1009
      %v1032 = vadd.f32 %v922, %v1014
      %v1033 = vadd.f32 %v925, %v1017
      %v1034 = vadd.f32 %v930, %v1022
      %v1035 = vadd.f32 %v933, %v1025
      %v1036 = vunpack.c.h.b16 %v592
      %v1037 = vpack.c.b16 %v940, %v940
      %v1038 = vpack.c.b16 %v1036, %v1036
      %v1040 = vshrl.u32 %v1037, 16
      %v1042 = vrot.slane %v1040, 4
      %v1043 = vshll.u32 %v1037, 16
      %v1045 = vrot.slane %v1043, 5
      %v1046 = vor.u32 %v1042, %v1045
      %v1047 = vrot.slane %v1046, 4
      %v1049 = vshll.u32 %v1038, 16
      %v1051 = vrot.slane %v1049, 5
      %v1052 = vsel %vm637, %v1047, %v1051
      %s1053 = scalar_lea.vmem %s4, 24
      %v1054 = vld [vmem:[%s1053] sm:$0xf]
      %v1055 = vld [vmem:[%s1053 + $0x4] sm:$0xf]
      %v1056 = vunpack.c.l.b16 %v1052
      %v1057 = vpack.c.b16 %v755, %v754
      %v1058 = vpack.c.b16 %v757, %v756
      %v1059 = vpack.c.b16 %v759, %v758
      %v1060 = vpack.c.b16 %v1056, %v760
      %v1063 = vunpack.c.l.b16 %v1054
      %v1064 = vunpack.c.l.b16 %v1055
      %v1065 = vpack.c.b16 %v1064, %v1063
      %v1068 = vsel %vm771, %v1057, 0
      %v1071 = vsel %vm771, %v1058, 0
      %v1074 = vsel %vm771, %v1059, 0
      %v1077 = vsel %vm771, %v1060, 0
      %1079 = vmatprep.subr.bf16.mxu0 0
      %1080 = vmatpush1.bf16.msra.mxu0 0
      %1081 = vmatprep.subr.bf16.mxu0 0
      %1082 = vmatpush1.bf16.msra.mxu0 0
      %1083 = vmatprep.subr.bf16.mxu0 0
      %1084 = vmatpush1.bf16.msra.mxu0 0
      %1085 = vmatprep.subr.bf16.mxu0 0
      %1086 = vmatpush1.bf16.msra.mxu0 0
      %1087 = vmatprep.subr.bf16.mxu0 0
      %1088 = vmatpush1.bf16.msra.mxu0 0
      %1089 = vmatprep.subr.bf16.mxu0 0
      %1090 = vmatpush1.bf16.msra.mxu0 0
      %1091 = vmatprep.subr.bf16.mxu0 0
      %1092 = vmatpush1.bf16.msra.mxu0 0
      %1093 = vmatprep.subr.bf16.mxu0 0
      %1094 = vmatpush1.bf16.msra.mxu0 %v1065
      %1095 = vmatprep.subr.bf16.mxu0 0
      %1096 = vmatpush2.bf16.msra.mxu0 0
      %1097 = vmatprep.subr.bf16.mxu0 0
      %1098 = vmatpush2.bf16.msra.mxu0 0
      %1099 = vmatprep.subr.bf16.mxu0 0
      %1100 = vmatpush2.bf16.msra.mxu0 0
      %1101 = vmatprep.subr.bf16.mxu0 0
      %1102 = vmatpush2.bf16.msra.mxu0 0
      %1103 = vmatprep.subr.bf16.mxu0 0
      %1104 = vmatpush2.bf16.msra.mxu0 0
      %1105 = vmatprep.subr.bf16.mxu0 0
      %1106 = vmatpush2.bf16.msra.mxu0 0
      %1107 = vmatprep.subr.bf16.mxu0 0
      %1108 = vmatpush2.bf16.msra.mxu0 0
      %1109 = vmatprep.subr.bf16.mxu0 0
      %1110 = vmatpush2.bf16.msra.mxu0 0
      %1111 = vmatprep.mubr.bf16.mxu0 0
      %1112 = vmatmul.mubr.bf16.gmra.mxu0 %v1068
      %v1113 = vpop.f32.mrf.mxu0
      %v1114 = vadd.f32 0.0, %v1113
      %v1115 = vpop.f32.mrf.mxu0
      %v1116 = vpop.f32.mrf.mxu0
      %v1117 = vadd.f32 0.0, %v1116
      %v1118 = vpop.f32.mrf.mxu0
      %1119 = vmatprep.mubr.bf16.mxu0 0
      %1120 = vmatmul.mubr.bf16.gmra.mxu0 %v1071
      %v1121 = vpop.f32.mrf.mxu0
      %v1122 = vadd.f32 0.0, %v1121
      %v1123 = vpop.f32.mrf.mxu0
      %v1124 = vpop.f32.mrf.mxu0
      %v1125 = vadd.f32 0.0, %v1124
      %v1126 = vpop.f32.mrf.mxu0
      %1127 = vmatprep.mubr.bf16.mxu0 0
      %1128 = vmatmul.mubr.bf16.gmra.mxu0 %v1074
      %v1129 = vpop.f32.mrf.mxu0
      %v1130 = vadd.f32 0.0, %v1129
      %v1131 = vpop.f32.mrf.mxu0
      %v1132 = vpop.f32.mrf.mxu0
      %v1133 = vadd.f32 0.0, %v1132
      %v1134 = vpop.f32.mrf.mxu0
      %1135 = vmatprep.mubr.bf16.mxu0 0
      %1136 = vmatmul.mubr.bf16.gmra.mxu0 %v1077
      %v1137 = vpop.f32.mrf.mxu0
      %v1138 = vadd.f32 0.0, %v1137
      %v1139 = vpop.f32.mrf.mxu0
      %v1140 = vpop.f32.mrf.mxu0
      %v1141 = vadd.f32 0.0, %v1140
      %v1142 = vpop.f32.mrf.mxu0
      %1143 = vdwg.mxu0
      %v1144 = vadd.f32 %v1028, %v1114
      %v1145 = vadd.f32 %v1029, %v1117
      %v1146 = vadd.f32 %v1030, %v1122
      %v1147 = vadd.f32 %v1031, %v1125
      %v1148 = vadd.f32 %v1032, %v1130
      %v1149 = vadd.f32 %v1033, %v1133
      %v1150 = vadd.f32 %v1034, %v1138
      %v1151 = vadd.f32 %v1035, %v1141
      %v1152 = vld [vmem:[%s5] sm:$0x1]
      %v1154 = vlaneseq
      %v1155 = vshrl.u32 %v1154, 7
      %v1156 = vsub.s32 0, %v1155
      %v1157 = vrot.slane %v1152, %v1156
      %v1159 = vadd.f32 %v1144, %v1157
      %v1160 = vadd.f32 %v1145, %v1157
      %v1161 = vadd.f32 %v1146, %v1157
      %v1162 = vadd.f32 %v1147, %v1157
      %v1163 = vadd.f32 %v1148, %v1157
      %v1164 = vadd.f32 %v1149, %v1157
      %v1165 = vadd.f32 %v1150, %v1157
      %v1166 = vadd.f32 %v1151, %v1157
      %vm1167 = vcmask 64512
      %1168 = vst.msk [vmem:[%s365] sm:$0xff] %vm1167, %v1159
      %1169 = vst.msk [vmem:[%s365 + $0x8] sm:$0xff] %vm1167, %v1160
      %1170 = vst.msk [vmem:[%s365 + $0x10] sm:$0xff] %vm1167, %v1161
      %1171 = vst.msk [vmem:[%s365 + $0x18] sm:$0xff] %vm1167, %v1162
      %1172 = vst.msk [vmem:[%s365 + $0x20] sm:$0xff] %vm1167, %v1163
      %1173 = vst.msk [vmem:[%s365 + $0x28] sm:$0xff] %vm1167, %v1164
      %1174 = vst.msk [vmem:[%s365 + $0x30] sm:$0xff] %vm1167, %v1165
      %1175 = vst.msk [vmem:[%s365 + $0x38] sm:$0xff] %vm1167, %v1166
      %s1176 = smul.u32 8, %s22
      %p1177 = scmp.lt.s32.totalorder %s21, 1
      %s1178 = scalar_select %p1177, %s21, 1
      %p1179 = scmp.lt.s32.totalorder %s1176, 7
      %s1180 = scalar_select %p1179, %s1176, 7
      %s1181 = smul.addr %s1178, 8
      %s1182 = sadd.s32 %s1180, %s1181
      %s1183 = smul.addr %s1182, 8
      %s1184 = scalar_lea.vmem %s6, %s1183
      // Predicated region
      $region45: #{upsample_forward.3} parent=43 // pred_check
        %p1185 = pneg %p193
      $region46: #{upsample_forward.3} parent=43 // pred_check_branch
        %1187 = sbr.rel (%p1185) target = $region48
      $region47: #{upsample_forward.3} parent=43 // pred_region
        %s1188 = smul.u32 8, %s22
      $region48: #{upsample_forward.3} parent=43 // pred_fallthru
        _
    $region44: #{upsample_forward.3} parent=5 // pred_fallthru
      _
    %p1189 = scmp.le.s32.totalorder 2, %s12
    // Predicated region
    $region49: #{upsample_forward.3} parent=5 // pred_check
      %p1190 = pneg %p1189
    $region50: #{upsample_forward.3} parent=5 // pred_check_branch
      %1192 = sbr.rel (%p1190) target = $region52
    $region51: #{upsample_forward.3} parent=5 // pred_region
      %s1193 = ssub.s32 %s12, 2
      // Predicated region
      $region53: #{upsample_forward.3} parent=51 // pred_check
        %p1194 = pneg %p199
      $region54: #{upsample_forward.3} parent=51 // pred_check_branch
        %1196 = sbr.rel (%p1194) target = $region56
      $region55: #{upsample_forward.3} parent=51 // pred_region
        %s1197 = smul.u32 8, %s24
        %p1198 = scmp.lt.s32.totalorder %s23, 1
        %s1199 = scalar_select %p1198, %s23, 1
        %p1200 = scmp.lt.s32.totalorder %s1197, 7
        %s1201 = scalar_select %p1200, %s1197, 7
        %s1202 = smul.addr %s1199, 8
        %s1203 = sadd.s32 %s1201, %s1202
        %s1204 = smul.addr %s1203, 8
        %s1205 = scalar_lea.vmem %s6, %s1204
      $region56: #{upsample_forward.3} parent=51 // pred_fallthru
        _
    $region52: #{upsample_forward.3} parent=5 // pred_fallthru
      _
  $region6: #{upsample_forward.3} parent=0 // loop_footer
    %s16 = sadd.s32 1, %s12
  $region7: #{upsample_forward.3} parent=0 // loop_footer_branch
    %11 = sbr.rel target = $region3
  $region8: #{upsample_forward.3} parent=0 // loop_exit
    _

</llo_original>
